<compile_context>
chip_gen: v6e
topology: v6e:2x2x1
jax: 0.10.0
libtpu: 0.0.40
codegen_flags: <defaults>
</compile_context>

<pallas_src>
import jax
import jax.numpy as jnp
from jax import lax
from jax.experimental import pallas as pl
from jax.experimental.pallas import tpu as pltpu


def dcr_kernel(x_ref, w1_ref, w2_ref, w3_ref, w4_ref, w5_ref, w6_ref,
               bias_ref, alpha_ref, out_ref):
    TB, H, WCin = x_ref.shape
    WC = out_ref.shape[2]          # lane-dense width = W * Cout
    M = TB * H                     # matmul M dimension (batch blocked into rows)

    # Per-row masks for the 3x3 H-shift at per-sample boundaries (rows where the
    # in-sample row index is 0 / H-1 must read zero-padding, not the adjacent sample).
    row = lax.broadcasted_iota(jnp.int32, (M, 1), 0)
    h_in = row % H
    not_top = (h_in != 0).astype(jnp.float32)        # valid "row h-1" reads
    not_bot = (h_in != H - 1).astype(jnp.float32)    # valid "row h+1" reads

    def bias_prelu(y, i):
        # BN scale already folded into the weights; only bias + PReLU remain.
        y = y + bias_ref[i, :]
        return jnp.where(y >= 0, y, alpha_ref[i, :] * y)

    def conv1x1(y, w_ref):
        # (M, W*Cin) @ block-diagonal (W*Cin, W*Cout) -> (M, W*Cout)
        return jnp.dot(y, w_ref[...], preferred_element_type=jnp.float32)

    def conv3x3(y, w_ref):
        # w_ref: (3*WC, WC) = stacked banded block weights for input rows h-1, h, h+1.
        # Shifts via XLU roll + boundary mask; single K=3*WC MXU matmul.
        y_up = pltpu.roll(y, 1, 0) * not_top          # input row h-1 (zero at h == 0)
        y_dn = pltpu.roll(y, M - 1, 0) * not_bot      # input row h+1 (zero at h == H-1)
        y3 = jnp.concatenate([y_up, y, y_dn], axis=1)  # (M, 3*WC)
        return jnp.dot(y3, w_ref[...], preferred_element_type=jnp.float32)

    x = x_ref[...].reshape(M, WCin).astype(jnp.float32)   # (TB*H, W*Cin), free relayout
    out1 = bias_prelu(conv1x1(x, w1_ref), 0)               # prlu1(bn1(conv1(x)))   -> cc_1
    out2 = bias_prelu(conv3x3(out1, w2_ref), 1)            # prlu2(bn2(conv2(.)))   -> cc_2
    out3 = bias_prelu(conv1x1(out2, w3_ref), 2)            # prlu3(bn3(conv3(.)))   -> cc_3
    out = bias_prelu(conv1x1(out3, w4_ref), 3) + out1      # out += cc_1
    out = bias_prelu(conv3x3(out, w5_ref), 4) + out2       # out += cc_2
    out = bias_prelu(conv1x1(out, w6_ref), 5) + out3       # return out + cc_3
    out_ref[...] = out.reshape(TB, H, WC).astype(out_ref.dtype)   # lane-dense 128 store


def _block_diag_1x1(w, W):
    """(Cin, Cout) 1x1 conv weight -> (W*Cin, W*Cout) block-diagonal matmul weight."""
    return jnp.kron(jnp.eye(W, dtype=w.dtype), w)


def _banded_3x3(w_hwio, W):
    """(3, 3, Cin, Cout) HWIO 3x3 weight -> (3*W*Cin, W*Cout) stacked banded block weight.

    Row block ky multiplies the input slab shifted to row h+ky-1; the band over W encodes
    the kx shifts and implicit zero padding at the left/right image edges.  The three ky
    blocks are stacked along K so one matmul covers the whole 3x3 stencil.
    """
    cin, cout = w_hwio.shape[2], w_hwio.shape[3]
    mats = []
    for ky in range(3):
        m = jnp.zeros((W * cin, W * cout), w_hwio.dtype)
        for kx in range(3):
            # eye offset 1-kx: entry (w_in, w_out) nonzero iff w_in = w_out + kx - 1.
            m = m + jnp.kron(jnp.eye(W, k=1 - kx, dtype=w_hwio.dtype), w_hwio[ky, kx])
        mats.append(m)
    return jnp.concatenate(mats, axis=0)


def dcr_block(x_nhwc, weights, scale, bias, alpha, tb=None):
    N, H, W, Cin = x_nhwc.shape
    Cout = weights[0].shape[-1]
    WCin, WCout = W * Cin, W * Cout

    if tb is None:
        # Target M = tb*H ~= 256 to fill the v6e/v7x MXU; on v5e a target of 8 (M=128)
        # already saturates its 4x128^2 array.  Keep >=2 grid steps on v7x (2 TCs).
        target = 16
        tb = next(t for t in range(min(N, target), 0, -1) if N % t == 0)
    assert N % tb == 0, (N, tb)

    # Fold the eval-mode BatchNorm scale into the conv weights (per output channel).
    w1, w2, w3, w4, w5, w6 = [w * s for w, s in zip(weights, scale)]
    w1b = _block_diag_1x1(w1, W)
    w2b = _banded_3x3(w2, W)          # (3*WCout, WCout)
    w3b = _block_diag_1x1(w3, W)
    w4b = _block_diag_1x1(w4, W)
    w5b = _banded_3x3(w5, W)
    w6b = _block_diag_1x1(w6, W)

    bias_big = jnp.tile(bias, (1, W))                   # (6, W*Cout) per-lane BN bias
    alpha_big = jnp.tile(alpha[:, None], (1, WCout))    # (6, W*Cout) per-lane PReLU alpha

    x_slab = x_nhwc.reshape(N, H, WCin)                 # lane-dense input slab (free in HBM)

    def full(shape):
        return pl.BlockSpec(shape, lambda n: (0,) * len(shape))

    mm1 = full((WCin, WCout))
    mm = full((WCout, WCout))
    mm3 = full((3 * WCout, WCout))
    vec = full((6, WCout))

    rows = N * H
    flops = (2 * rows * WCin * WCout                  # conv1
             + 3 * 2 * rows * WCout * WCout           # conv3/4/6
             + 2 * 2 * rows * (3 * WCout) * WCout)    # conv2/5 (single K=3*WC matmul each)
    operands = [x_slab, w1b, w2b, w3b, w4b, w5b, w6b, bias_big, alpha_big]
    bytes_accessed = int(sum(int(a.size) for a in operands) * 4 + rows * WCout * 4)

    out_slab = pl.pallas_call(
        dcr_kernel,
        out_shape=jax.ShapeDtypeStruct((N, H, WCout), jnp.float32),
        grid_spec=pltpu.PrefetchScalarGridSpec(
            num_scalar_prefetch=0,
            grid=(N // tb,),
            in_specs=[pl.BlockSpec((tb, H, WCin), lambda n: (n, 0, 0)),
                      mm1, mm3, mm, mm, mm3, mm,
                      vec, vec],
            out_specs=pl.BlockSpec((tb, H, WCout), lambda n: (n, 0, 0)),
        ),
        compiler_params=pltpu.CompilerParams(
            dimension_semantics=("parallel",),
            vmem_limit_bytes=32 * 1024 * 1024),
        cost_estimate=pl.CostEstimate(flops=int(flops), transcendentals=0,
                                      bytes_accessed=bytes_accessed),
    )(*operands)

    return out_slab.reshape(N, H, W, Cout)


def ref_forward(x_nhwc, weights, scale, bias, alpha):
    """Pure-JAX reference (NHWC layout, HWIO weights, full f32 precision)."""
    w1, w2, w3, w4, w5, w6 = weights
    dn = ('NHWC', 'HWIO', 'NHWC')

    def conv(x, w, pad):
        if w.ndim == 2:
            w = w[None, None]
        return lax.conv_general_dilated(x, w, (1, 1), pad, dimension_numbers=dn,
                                        precision=lax.Precision.HIGHEST)

    def bn_prelu(y, i):
        y = y * scale[i] + bias[i]
        return jnp.where(y >= 0, y, alpha[i] * y)

    out1 = bn_prelu(conv(x_nhwc, w1, 'VALID'), 0)
    out2 = bn_prelu(conv(out1, w2, 'SAME'), 1)
    out3 = bn_prelu(conv(out2, w3, 'VALID'), 2)
    out = bn_prelu(conv(out3, w4, 'VALID'), 3) + out1
    out = bn_prelu(conv(out, w5, 'SAME'), 4) + out2
    out = bn_prelu(conv(out, w6, 'VALID'), 5) + out3
    return out


if __name__ == "__main__":
    # W * Cout = 128 -> lane-dense slabs; N=4 with tb=2 exercises both batch-blocking
    # (2 samples per block -> boundary masks active) and a multi-step pipelined grid.
    N, H, W, Cin, Cout = 4, 16, 16, 4, 8
    key = jax.random.PRNGKey(0)
    ks = jax.random.split(key, 12)

    # Input in PyTorch's NCHW, transposed to the kernel's NHWC layout.
    x_nchw = jax.random.normal(ks[0], (N, Cin, H, W), jnp.float32)
    x = jnp.transpose(x_nchw, (0, 2, 3, 1))

    def init_w(k, shape, fan_in):
        return jax.random.normal(k, shape, jnp.float32) / jnp.sqrt(float(fan_in))

    # Conv weights: (Cin, Cout) for 1x1, HWIO for 3x3 (PyTorch OIHW -> transpose (2,3,1,0)).
    w1 = init_w(ks[1], (Cin, Cout), Cin)
    w2 = init_w(ks[2], (3, 3, Cout, Cout), 9 * Cout)
    w3 = init_w(ks[3], (Cout, Cout), Cout)
    w4 = init_w(ks[4], (Cout, Cout), Cout)
    w5 = init_w(ks[5], (3, 3, Cout, Cout), 9 * Cout)
    w6 = init_w(ks[6], (Cout, Cout), Cout)
    weights = [w1, w2, w3, w4, w5, w6]

    # BatchNorm (eval mode) parameters for the 6 BN layers, folded to scale/bias.
    eps = 1e-5
    gamma = 1.0 + 0.1 * jax.random.normal(ks[7], (6, Cout), jnp.float32)
    beta = 0.1 * jax.random.normal(ks[8], (6, Cout), jnp.float32)
    running_mean = 0.1 * jax.random.normal(ks[9], (6, Cout), jnp.float32)
    running_var = 1.0 + 0.1 * jax.random.uniform(ks[10], (6, Cout), jnp.float32)
    scale = gamma / jnp.sqrt(running_var + eps)
    bias = beta - running_mean * scale

    # nn.PReLU() default: single shared alpha = 0.25 per layer.
    alpha = jnp.full((6,), 0.25, jnp.float32)

    out = jax.block_until_ready(dcr_block(x, weights, scale, bias, alpha, tb=2))
    ref = ref_forward(x, weights, scale, bias, alpha)

    assert out.shape == (N, H, W, Cout), out.shape
    max_err = float(jnp.max(jnp.abs(out - ref)))
    assert jnp.allclose(out, ref, atol=1e-3, rtol=1e-3), f"max_err={max_err}"
    print("KERNEL_OK")
</pallas_src>

<mosaic_0001>
module attributes {stable_mosaic.version = 11 : i64} {
  func.func @dcr_kernel(%arg0: i32, %arg1: memref<2x16x64xf32, #tpu.memory_space<vmem>>, %arg2: memref<64x128xf32, #tpu.memory_space<vmem>>, %arg3: memref<384x128xf32, #tpu.memory_space<vmem>>, %arg4: memref<128x128xf32, #tpu.memory_space<vmem>>, %arg5: memref<128x128xf32, #tpu.memory_space<vmem>>, %arg6: memref<384x128xf32, #tpu.memory_space<vmem>>, %arg7: memref<128x128xf32, #tpu.memory_space<vmem>>, %arg8: memref<6x128xf32, #tpu.memory_space<vmem>>, %arg9: memref<6x128xf32, #tpu.memory_space<vmem>>, %arg10: memref<2x16x128xf32, #tpu.memory_space<vmem>>) attributes {dimension_semantics = [#tpu.dimension_semantics<parallel>], iteration_bounds = array<i64: 2>, scalar_prefetch = 0 : i64, scratch_operands = 0 : i64, tpu.core_type = #tpu.core_type<tc>, window_params = [{transform_indices = @transform_0, window_bounds = array<i64: 2, 16, 64>}, {pipeline_mode = #tpu.pipeline_mode<synchronous>, transform_indices = @transform_1, window_bounds = array<i64: 64, 128>}, {pipeline_mode = #tpu.pipeline_mode<synchronous>, transform_indices = @transform_2, window_bounds = array<i64: 384, 128>}, {pipeline_mode = #tpu.pipeline_mode<synchronous>, transform_indices = @transform_3, window_bounds = array<i64: 128, 128>}, {pipeline_mode = #tpu.pipeline_mode<synchronous>, transform_indices = @transform_4, window_bounds = array<i64: 128, 128>}, {pipeline_mode = #tpu.pipeline_mode<synchronous>, transform_indices = @transform_5, window_bounds = array<i64: 384, 128>}, {pipeline_mode = #tpu.pipeline_mode<synchronous>, transform_indices = @transform_6, window_bounds = array<i64: 128, 128>}, {pipeline_mode = #tpu.pipeline_mode<synchronous>, transform_indices = @transform_7, window_bounds = array<i64: 6, 128>}, {pipeline_mode = #tpu.pipeline_mode<synchronous>, transform_indices = @transform_8, window_bounds = array<i64: 6, 128>}, {transform_indices = @transform_9, window_bounds = array<i64: 2, 16, 128>}]} {
    %0 = tpu.iota {dimensions = array<i32: 0>} : vector<32x1xi32>
    %c16_i32 = arith.constant 16 : i32
    %c0_i32 = arith.constant 0 : i32
    %1 = arith.cmpi eq, %c16_i32, %c0_i32 : i32
    %c1_i32 = arith.constant 1 : i32
    %2 = arith.select %1, %c1_i32, %c16_i32 : i32
    %3 = vector.broadcast %2 : i32 to vector<32x1xi32>
    %4 = arith.remsi %0, %3 : vector<32x1xi32>
    %c0_i32_0 = arith.constant 0 : i32
    %5 = vector.broadcast %c0_i32_0 : i32 to vector<32x1xi32>
    %6 = arith.cmpi ne, %4, %5 : vector<32x1xi32>
    %c0_i32_1 = arith.constant 0 : i32
    %7 = vector.broadcast %c0_i32_1 : i32 to vector<32x1xi32>
    %8 = arith.cmpi slt, %4, %7 : vector<32x1xi32>
    %c0_i32_2 = arith.constant 0 : i32
    %9 = arith.cmpi slt, %2, %c0_i32_2 : i32
    %10 = vector.broadcast %9 : i1 to vector<32x1xi1>
    %11 = vector.broadcast %10 : vector<32x1xi1> to vector<32x1xi1>
    %12 = arith.xori %8, %11 : vector<32x1xi1>
    %13 = arith.andi %12, %6 : vector<32x1xi1>
    %14 = vector.broadcast %2 : i32 to vector<32x1xi32>
    %15 = arith.addi %4, %14 : vector<32x1xi32>
    %16 = arith.select %13, %15, %4 : vector<32x1xi1>, vector<32x1xi32>
    %c0_i32_3 = arith.constant 0 : i32
    %17 = vector.broadcast %c0_i32_3 : i32 to vector<32x1xi32>
    %18 = arith.cmpi ne, %16, %17 : vector<32x1xi32>
    %19 = arith.extui %18 : vector<32x1xi1> to vector<32x1xi32>
    %20 = arith.sitofp %19 : vector<32x1xi32> to vector<32x1xf32>
    %c15_i32 = arith.constant 15 : i32
    %21 = vector.broadcast %c15_i32 : i32 to vector<32x1xi32>
    %22 = arith.cmpi ne, %16, %21 : vector<32x1xi32>
    %23 = arith.extui %22 : vector<32x1xi1> to vector<32x1xi32>
    %24 = arith.sitofp %23 : vector<32x1xi32> to vector<32x1xf32>
    %c0 = arith.constant 0 : index
    %c0_4 = arith.constant 0 : index
    %c0_5 = arith.constant 0 : index
    %25 = vector.load %arg1[%c0, %c0_4, %c0_5] : memref<2x16x64xf32, #tpu.memory_space<vmem>>, vector<2x16x64xf32>
    %26 = vector.shape_cast %25 : vector<2x16x64xf32> to vector<32x64xf32>
    %c0_6 = arith.constant 0 : index
    %c0_7 = arith.constant 0 : index
    %27 = vector.load %arg2[%c0_6, %c0_7] : memref<64x128xf32, #tpu.memory_space<vmem>>, vector<64x128xf32>
    %cst = arith.constant dense<0.000000e+00> : vector<32x128xf32>
    %28 = tpu.matmul %26, %27, %cst {dimension_numbers = #tpu.dot_dimension_numbers<[1], [0], [0], [1], [0, 0, 1, 1], [], []>} : vector<32x64xf32>, vector<64x128xf32>, vector<32x128xf32> -> vector<32x128xf32>
    %c0_8 = arith.constant 0 : index
    %c0_9 = arith.constant 0 : index
    %29 = vector.load %arg8[%c0_8, %c0_9] : memref<6x128xf32, #tpu.memory_space<vmem>>, vector<1x128xf32>
    %30 = vector.shape_cast %29 : vector<1x128xf32> to vector<128xf32>
    %31 = vector.shape_cast %30 : vector<128xf32> to vector<1x128xf32>
    %32 = vector.broadcast %31 : vector<1x128xf32> to vector<32x128xf32>
    %33 = arith.addf %28, %32 : vector<32x128xf32>
    %cst_10 = arith.constant 0.000000e+00 : f32
    %34 = vector.broadcast %cst_10 : f32 to vector<32x128xf32>
    %35 = arith.cmpf oge, %33, %34 : vector<32x128xf32>
    %c0_11 = arith.constant 0 : index
    %c0_12 = arith.constant 0 : index
    %36 = vector.load %arg9[%c0_11, %c0_12] : memref<6x128xf32, #tpu.memory_space<vmem>>, vector<1x128xf32>
    %37 = vector.shape_cast %36 : vector<1x128xf32> to vector<128xf32>
    %38 = vector.shape_cast %37 : vector<128xf32> to vector<1x128xf32>
    %39 = vector.broadcast %38 : vector<1x128xf32> to vector<32x128xf32>
    %40 = arith.mulf %39, %33 : vector<32x128xf32>
    %41 = arith.select %35, %33, %40 : vector<32x128xi1>, vector<32x128xf32>
    %c1_i32_13 = arith.constant 1 : i32
    %42 = tpu.dynamic_rotate %41 by %c1_i32_13 dim 0 : vector<32x128xf32>, i32 -> vector<32x128xf32>
    %43 = vector.broadcast %20 : vector<32x1xf32> to vector<32x128xf32>
    %44 = arith.mulf %42, %43 : vector<32x128xf32>
    %c31_i32 = arith.constant 31 : i32
    %45 = tpu.dynamic_rotate %41 by %c31_i32 dim 0 : vector<32x128xf32>, i32 -> vector<32x128xf32>
    %46 = vector.broadcast %24 : vector<32x1xf32> to vector<32x128xf32>
    %47 = arith.mulf %45, %46 : vector<32x128xf32>
    %48 = tpu.concatenate %44, %41, %47 in 1 : vector<32x128xf32>, vector<32x128xf32>, vector<32x128xf32> -> vector<32x384xf32>
    %c0_14 = arith.constant 0 : index
    %c0_15 = arith.constant 0 : index
    %49 = vector.load %arg3[%c0_14, %c0_15] : memref<384x128xf32, #tpu.memory_space<vmem>>, vector<384x128xf32>
    %cst_16 = arith.constant dense<0.000000e+00> : vector<32x128xf32>
    %50 = tpu.matmul %48, %49, %cst_16 {dimension_numbers = #tpu.dot_dimension_numbers<[1], [0], [0], [1], [0, 0, 1, 1], [], []>} : vector<32x384xf32>, vector<384x128xf32>, vector<32x128xf32> -> vector<32x128xf32>
    %c1 = arith.constant 1 : index
    %c0_17 = arith.constant 0 : index
    %51 = vector.load %arg8[%c1, %c0_17] : memref<6x128xf32, #tpu.memory_space<vmem>>, vector<1x128xf32>
    %52 = vector.shape_cast %51 : vector<1x128xf32> to vector<128xf32>
    %53 = vector.shape_cast %52 : vector<128xf32> to vector<1x128xf32>
    %54 = vector.broadcast %53 : vector<1x128xf32> to vector<32x128xf32>
    %55 = arith.addf %50, %54 : vector<32x128xf32>
    %cst_18 = arith.constant 0.000000e+00 : f32
    %56 = vector.broadcast %cst_18 : f32 to vector<32x128xf32>
    %57 = arith.cmpf oge, %55, %56 : vector<32x128xf32>
    %c1_19 = arith.constant 1 : index
    %c0_20 = arith.constant 0 : index
    %58 = vector.load %arg9[%c1_19, %c0_20] : memref<6x128xf32, #tpu.memory_space<vmem>>, vector<1x128xf32>
    %59 = vector.shape_cast %58 : vector<1x128xf32> to vector<128xf32>
    %60 = vector.shape_cast %59 : vector<128xf32> to vector<1x128xf32>
    %61 = vector.broadcast %60 : vector<1x128xf32> to vector<32x128xf32>
    %62 = arith.mulf %61, %55 : vector<32x128xf32>
    %63 = arith.select %57, %55, %62 : vector<32x128xi1>, vector<32x128xf32>
    %c0_21 = arith.constant 0 : index
    %c0_22 = arith.constant 0 : index
    %64 = vector.load %arg4[%c0_21, %c0_22] : memref<128x128xf32, #tpu.memory_space<vmem>>, vector<128x128xf32>
    %cst_23 = arith.constant dense<0.000000e+00> : vector<32x128xf32>
    %65 = tpu.matmul %63, %64, %cst_23 {dimension_numbers = #tpu.dot_dimension_numbers<[1], [0], [0], [1], [0, 0, 1, 1], [], []>} : vector<32x128xf32>, vector<128x128xf32>, vector<32x128xf32> -> vector<32x128xf32>
    %c2 = arith.constant 2 : index
    %c0_24 = arith.constant 0 : index
    %66 = vector.load %arg8[%c2, %c0_24] : memref<6x128xf32, #tpu.memory_space<vmem>>, vector<1x128xf32>
    %67 = vector.shape_cast %66 : vector<1x128xf32> to vector<128xf32>
    %68 = vector.shape_cast %67 : vector<128xf32> to vector<1x128xf32>
    %69 = vector.broadcast %68 : vector<1x128xf32> to vector<32x128xf32>
    %70 = arith.addf %65, %69 : vector<32x128xf32>
    %cst_25 = arith.constant 0.000000e+00 : f32
    %71 = vector.broadcast %cst_25 : f32 to vector<32x128xf32>
    %72 = arith.cmpf oge, %70, %71 : vector<32x128xf32>
    %c2_26 = arith.constant 2 : index
    %c0_27 = arith.constant 0 : index
    %73 = vector.load %arg9[%c2_26, %c0_27] : memref<6x128xf32, #tpu.memory_space<vmem>>, vector<1x128xf32>
    %74 = vector.shape_cast %73 : vector<1x128xf32> to vector<128xf32>
    %75 = vector.shape_cast %74 : vector<128xf32> to vector<1x128xf32>
    %76 = vector.broadcast %75 : vector<1x128xf32> to vector<32x128xf32>
    %77 = arith.mulf %76, %70 : vector<32x128xf32>
    %78 = arith.select %72, %70, %77 : vector<32x128xi1>, vector<32x128xf32>
    %c0_28 = arith.constant 0 : index
    %c0_29 = arith.constant 0 : index
    %79 = vector.load %arg5[%c0_28, %c0_29] : memref<128x128xf32, #tpu.memory_space<vmem>>, vector<128x128xf32>
    %cst_30 = arith.constant dense<0.000000e+00> : vector<32x128xf32>
    %80 = tpu.matmul %78, %79, %cst_30 {dimension_numbers = #tpu.dot_dimension_numbers<[1], [0], [0], [1], [0, 0, 1, 1], [], []>} : vector<32x128xf32>, vector<128x128xf32>, vector<32x128xf32> -> vector<32x128xf32>
    %c3 = arith.constant 3 : index
    %c0_31 = arith.constant 0 : index
    %81 = vector.load %arg8[%c3, %c0_31] : memref<6x128xf32, #tpu.memory_space<vmem>>, vector<1x128xf32>
    %82 = vector.shape_cast %81 : vector<1x128xf32> to vector<128xf32>
    %83 = vector.shape_cast %82 : vector<128xf32> to vector<1x128xf32>
    %84 = vector.broadcast %83 : vector<1x128xf32> to vector<32x128xf32>
    %85 = arith.addf %80, %84 : vector<32x128xf32>
    %cst_32 = arith.constant 0.000000e+00 : f32
    %86 = vector.broadcast %cst_32 : f32 to vector<32x128xf32>
    %87 = arith.cmpf oge, %85, %86 : vector<32x128xf32>
    %c3_33 = arith.constant 3 : index
    %c0_34 = arith.constant 0 : index
    %88 = vector.load %arg9[%c3_33, %c0_34] : memref<6x128xf32, #tpu.memory_space<vmem>>, vector<1x128xf32>
    %89 = vector.shape_cast %88 : vector<1x128xf32> to vector<128xf32>
    %90 = vector.shape_cast %89 : vector<128xf32> to vector<1x128xf32>
    %91 = vector.broadcast %90 : vector<1x128xf32> to vector<32x128xf32>
    %92 = arith.mulf %91, %85 : vector<32x128xf32>
    %93 = arith.select %87, %85, %92 : vector<32x128xi1>, vector<32x128xf32>
    %94 = arith.addf %93, %41 : vector<32x128xf32>
    %c1_i32_35 = arith.constant 1 : i32
    %95 = tpu.dynamic_rotate %94 by %c1_i32_35 dim 0 : vector<32x128xf32>, i32 -> vector<32x128xf32>
    %96 = vector.broadcast %20 : vector<32x1xf32> to vector<32x128xf32>
    %97 = arith.mulf %95, %96 : vector<32x128xf32>
    %c31_i32_36 = arith.constant 31 : i32
    %98 = tpu.dynamic_rotate %94 by %c31_i32_36 dim 0 : vector<32x128xf32>, i32 -> vector<32x128xf32>
    %99 = vector.broadcast %24 : vector<32x1xf32> to vector<32x128xf32>
    %100 = arith.mulf %98, %99 : vector<32x128xf32>
    %101 = tpu.concatenate %97, %94, %100 in 1 : vector<32x128xf32>, vector<32x128xf32>, vector<32x128xf32> -> vector<32x384xf32>
    %c0_37 = arith.constant 0 : index
    %c0_38 = arith.constant 0 : index
    %102 = vector.load %arg6[%c0_37, %c0_38] : memref<384x128xf32, #tpu.memory_space<vmem>>, vector<384x128xf32>
    %cst_39 = arith.constant dense<0.000000e+00> : vector<32x128xf32>
    %103 = tpu.matmul %101, %102, %cst_39 {dimension_numbers = #tpu.dot_dimension_numbers<[1], [0], [0], [1], [0, 0, 1, 1], [], []>} : vector<32x384xf32>, vector<384x128xf32>, vector<32x128xf32> -> vector<32x128xf32>
    %c4 = arith.constant 4 : index
    %c0_40 = arith.constant 0 : index
    %104 = vector.load %arg8[%c4, %c0_40] : memref<6x128xf32, #tpu.memory_space<vmem>>, vector<1x128xf32>
    %105 = vector.shape_cast %104 : vector<1x128xf32> to vector<128xf32>
    %106 = vector.shape_cast %105 : vector<128xf32> to vector<1x128xf32>
    %107 = vector.broadcast %106 : vector<1x128xf32> to vector<32x128xf32>
    %108 = arith.addf %103, %107 : vector<32x128xf32>
    %cst_41 = arith.constant 0.000000e+00 : f32
    %109 = vector.broadcast %cst_41 : f32 to vector<32x128xf32>
    %110 = arith.cmpf oge, %108, %109 : vector<32x128xf32>
    %c4_42 = arith.constant 4 : index
    %c0_43 = arith.constant 0 : index
    %111 = vector.load %arg9[%c4_42, %c0_43] : memref<6x128xf32, #tpu.memory_space<vmem>>, vector<1x128xf32>
    %112 = vector.shape_cast %111 : vector<1x128xf32> to vector<128xf32>
    %113 = vector.shape_cast %112 : vector<128xf32> to vector<1x128xf32>
    %114 = vector.broadcast %113 : vector<1x128xf32> to vector<32x128xf32>
    %115 = arith.mulf %114, %108 : vector<32x128xf32>
    %116 = arith.select %110, %108, %115 : vector<32x128xi1>, vector<32x128xf32>
    %117 = arith.addf %116, %63 : vector<32x128xf32>
    %c0_44 = arith.constant 0 : index
    %c0_45 = arith.constant 0 : index
    %118 = vector.load %arg7[%c0_44, %c0_45] : memref<128x128xf32, #tpu.memory_space<vmem>>, vector<128x128xf32>
    %cst_46 = arith.constant dense<0.000000e+00> : vector<32x128xf32>
    %119 = tpu.matmul %117, %118, %cst_46 {dimension_numbers = #tpu.dot_dimension_numbers<[1], [0], [0], [1], [0, 0, 1, 1], [], []>} : vector<32x128xf32>, vector<128x128xf32>, vector<32x128xf32> -> vector<32x128xf32>
    %c5 = arith.constant 5 : index
    %c0_47 = arith.constant 0 : index
    %120 = vector.load %arg8[%c5, %c0_47] : memref<6x128xf32, #tpu.memory_space<vmem>>, vector<1x128xf32>
    %121 = vector.shape_cast %120 : vector<1x128xf32> to vector<128xf32>
    %122 = vector.shape_cast %121 : vector<128xf32> to vector<1x128xf32>
    %123 = vector.broadcast %122 : vector<1x128xf32> to vector<32x128xf32>
    %124 = arith.addf %119, %123 : vector<32x128xf32>
    %cst_48 = arith.constant 0.000000e+00 : f32
    %125 = vector.broadcast %cst_48 : f32 to vector<32x128xf32>
    %126 = arith.cmpf oge, %124, %125 : vector<32x128xf32>
    %c5_49 = arith.constant 5 : index
    %c0_50 = arith.constant 0 : index
    %127 = vector.load %arg9[%c5_49, %c0_50] : memref<6x128xf32, #tpu.memory_space<vmem>>, vector<1x128xf32>
    %128 = vector.shape_cast %127 : vector<1x128xf32> to vector<128xf32>
    %129 = vector.shape_cast %128 : vector<128xf32> to vector<1x128xf32>
    %130 = vector.broadcast %129 : vector<1x128xf32> to vector<32x128xf32>
    %131 = arith.mulf %130, %124 : vector<32x128xf32>
    %132 = arith.select %126, %124, %131 : vector<32x128xi1>, vector<32x128xf32>
    %133 = arith.addf %132, %78 : vector<32x128xf32>
    %134 = vector.shape_cast %133 : vector<32x128xf32> to vector<2x16x128xf32>
    %c0_51 = arith.constant 0 : index
    %c0_52 = arith.constant 0 : index
    %c0_53 = arith.constant 0 : index
    %135 = vector.load %arg10[%c0_51, %c0_52, %c0_53] : memref<2x16x128xf32, #tpu.memory_space<vmem>>, vector<2x16x128xf32>
    tpu.vector_store %arg10[%c0_51, %c0_52, %c0_53], %134 {strides = array<i32>} : memref<2x16x128xf32, #tpu.memory_space<vmem>>, vector<2x16x128xf32>,
    return
  }
  func.func @transform_0(%arg0: i32) -> (i32, i32, i32) {
    %c0_i32 = arith.constant 0 : i32
    %c0_i32_0 = arith.constant 0 : i32
    %c0_i32_1 = arith.constant 0 : i32
    return %arg0, %c0_i32, %c0_i32_0 : i32, i32, i32
  }
  func.func @transform_1(%arg0: i32) -> (i32, i32) {
    %c0_i32 = arith.constant 0 : i32
    %c0_i32_0 = arith.constant 0 : i32
    %c0_i32_1 = arith.constant 0 : i32
    return %c0_i32, %c0_i32_0 : i32, i32
  }
  func.func @transform_2(%arg0: i32) -> (i32, i32) {
    %c0_i32 = arith.constant 0 : i32
    %c0_i32_0 = arith.constant 0 : i32
    %c0_i32_1 = arith.constant 0 : i32
    return %c0_i32, %c0_i32_0 : i32, i32
  }
  func.func @transform_3(%arg0: i32) -> (i32, i32) {
    %c0_i32 = arith.constant 0 : i32
    %c0_i32_0 = arith.constant 0 : i32
    %c0_i32_1 = arith.constant 0 : i32
    return %c0_i32, %c0_i32_0 : i32, i32
  }
  func.func @transform_4(%arg0: i32) -> (i32, i32) {
    %c0_i32 = arith.constant 0 : i32
    %c0_i32_0 = arith.constant 0 : i32
    %c0_i32_1 = arith.constant 0 : i32
    return %c0_i32, %c0_i32_0 : i32, i32
  }
  func.func @transform_5(%arg0: i32) -> (i32, i32) {
    %c0_i32 = arith.constant 0 : i32
    %c0_i32_0 = arith.constant 0 : i32
    %c0_i32_1 = arith.constant 0 : i32
    return %c0_i32, %c0_i32_0 : i32, i32
  }
  func.func @transform_6(%arg0: i32) -> (i32, i32) {
    %c0_i32 = arith.constant 0 : i32
    %c0_i32_0 = arith.constant 0 : i32
    %c0_i32_1 = arith.constant 0 : i32
    return %c0_i32, %c0_i32_0 : i32, i32
  }
  func.func @transform_7(%arg0: i32) -> (i32, i32) {
    %c0_i32 = arith.constant 0 : i32
    %c0_i32_0 = arith.constant 0 : i32
    %c0_i32_1 = arith.constant 0 : i32
    return %c0_i32, %c0_i32_0 : i32, i32
  }
  func.func @transform_8(%arg0: i32) -> (i32, i32) {
    %c0_i32 = arith.constant 0 : i32
    %c0_i32_0 = arith.constant 0 : i32
    %c0_i32_1 = arith.constant 0 : i32
    return %c0_i32, %c0_i32_0 : i32, i32
  }
  func.func @transform_9(%arg0: i32) -> (i32, i32, i32) {
    %c0_i32 = arith.constant 0 : i32
    %c0_i32_0 = arith.constant 0 : i32
    %c0_i32_1 = arith.constant 0 : i32
    return %arg0, %c0_i32, %c0_i32_0 : i32, i32, i32
  }
}

</mosaic_0001>

<llo_original>
// kernel: tpu_custom_call.1
$region0: #{tpu_custom_call.1}
  #allocation0 [shape = 'u32[]', space=smem, size = 0x4, offset = 0x4, fixed_abs, tag = 'smem constant byte address 0x4 - core index']
  #allocation1 [shape = 'u32[144,128]{1,0:T(1,128)}', space=vmem, size = 0x12000, scoped, tag = 'internal scratch']
  %s0 = inlined_call_operand.hbm [shape: f32[4,16,64], index: 0, kind: input, shape index: {}]
  %s1 = inlined_call_operand.hbm [shape: f32[64,128], index: 1, kind: input, shape index: {}]
  %s2 = inlined_call_operand.hbm [shape: f32[384,128], index: 2, kind: input, shape index: {}]
  %s3 = inlined_call_operand.hbm [shape: f32[128,128], index: 3, kind: input, shape index: {}]
  %s4 = inlined_call_operand.hbm [shape: f32[128,128], index: 4, kind: input, shape index: {}]
  %s5 = inlined_call_operand.hbm [shape: f32[384,128], index: 5, kind: input, shape index: {}]
  %s6 = inlined_call_operand.hbm [shape: f32[128,128], index: 6, kind: input, shape index: {}]
  %s7 = inlined_call_operand.vmem [shape: f32[6,128], index: 7, kind: input, shape index: {}]
  %s8 = inlined_call_operand.hbm [shape: f32[6,128], index: 8, kind: input, shape index: {}]
  %s9 = inlined_call_operand.hbm [shape: f32[4,16,128], index: 9, kind: output, shape index: {}]
  %s10 = sld [smem:[#allocation0]]
  $region101: #{tpu_custom_call.1} parent=0
    _
  %s12 = ssub.s32 1, %s10
  %s13 = scalar_select 0, %s12, %s10
  $region1: #{tpu_custom_call.1} parent=0
    #allocation2 [shape = 'u8[32768]{0}', space=vmem, size = 0x8000, scoped, tag = 'input window, operand 0']
    #allocation3 [shape = 's32[2]{0}', space=sflag, size = 0x8, scoped, tag = 'scoped memory for tpu_custom_call.1']
    #allocation4 [shape = 's32[2]{0}', space=sflag, size = 0x8, scoped, tag = 'scoped memory for tpu_custom_call.1']
    #allocation5 [shape = 'u8[32768]{0}', space=vmem, size = 0x8000, scoped, tag = 'input window, operand 1, single buffered']
    #allocation6 [shape = 's32[1]{0}', space=sflag, size = 0x4, scoped, tag = 'scoped memory for tpu_custom_call.1']
    #allocation7 [shape = 'u8[196608]{0}', space=vmem, size = 0x30000, scoped, tag = 'input window, operand 2, single buffered']
    #allocation8 [shape = 'u8[65536]{0}', space=vmem, size = 0x10000, scoped, tag = 'input window, operand 3, single buffered']
    #allocation9 [shape = 's32[1]{0}', space=sflag, size = 0x4, scoped, tag = 'scoped memory for tpu_custom_call.1']
    #allocation10 [shape = 'u8[65536]{0}', space=vmem, size = 0x10000, scoped, tag = 'input window, operand 4, single buffered']
    #allocation11 [shape = 'u8[196608]{0}', space=vmem, size = 0x30000, scoped, tag = 'input window, operand 5, single buffered']
    #allocation12 [shape = 's32[1]{0}', space=sflag, size = 0x4, scoped, tag = 'scoped memory for tpu_custom_call.1']
    #allocation13 [shape = 'u8[65536]{0}', space=vmem, size = 0x10000, scoped, tag = 'input window, operand 6, single buffered']
    #allocation14 [shape = 'u8[4096]{0}', space=vmem, size = 0x1000, scoped, tag = 'input window, operand 8, single buffered']
    #allocation15 [shape = 's32[1]{0}', space=sflag, size = 0x4, scoped, tag = 'scoped memory for tpu_custom_call.1']
    #allocation16 [shape = 'u8[32768]{0}', space=vmem, size = 0x8000, scoped, tag = 'output window, operand 0']
    %14 = vsyncpa [#allocation3], 0
    %s15 = scalar_lea.sflag [#allocation3], 1
    %16 = vsyncpa %s15, 0
    %17 = vsyncpa [#allocation6], 0
    %18 = vsyncpa [#allocation9], 0
    %19 = vsyncpa [#allocation12], 0
    %20 = vsyncpa [#allocation15], 0
    %21 = vsyncpa [#allocation4], 0
    %s22 = scalar_lea.sflag [#allocation4], 1
    %23 = vsyncpa %s22, 0
    loop: start=0, step=1, limit=4
    $region2: #{tpu_custom_call.1} parent=1 // loop_pre_header
      _
    $region3: #{tpu_custom_call.1} parent=1 // loop_header
      %s25 = sphi 0, %s29
      %p26 = scmp.ge.s32.totalorder %s25, 4
      %s35 = sphi 0, %s37
      %s38 = sphi 0, %s35
      %s39 = sphi 0, %s38
      %s55 = sphi 0, %s39
      %s59 = sphi 0, %s59
      %s61 = sphi 0, %s59
      %s62 = sphi 0, %s61
      %s76 = sphi 0, %s62
      %s80 = sphi 0, %s80
      %s82 = sphi 0, %s80
      %s83 = sphi 0, %s82
      %s97 = sphi 0, %s83
      %s101 = sphi 0, %s101
      %s103 = sphi 0, %s101
      %s104 = sphi 0, %s103
      %s118 = sphi 0, %s104
      %s122 = sphi 0, %s122
      %s124 = sphi 0, %s122
      %s125 = sphi 0, %s124
      %s139 = sphi 0, %s125
      %s143 = sphi 0, %s143
      %s145 = sphi 0, %s143
      %s146 = sphi 0, %s145
      %s160 = sphi 0, %s146
      %s164 = sphi 0, %s164
      %s166 = sphi 0, %s164
      %s167 = sphi 0, %s166
      %s181 = sphi 0, %s167
      %s185 = sphi 0, %s185
      %s187 = sphi 0, %s185
      %s188 = sphi 0, %s187
      %s202 = sphi 0, %s188
      %s206 = sphi 0, %s206
      %s208 = sphi 0, %s206
      %s209 = sphi 0, %s208
      %s223 = sphi 0, %s209
      %s229 = sphi 0, %s231
      %s232 = sphi 0, %s229
      %s233 = sphi 0, %s232
      %s249 = sphi 0, %s233
    $region4: #{tpu_custom_call.1} parent=1 // loop_header_branch
      %28 = sbr.rel (%p26) target = $region8
    $region5: #{tpu_custom_call.1} parent=1 // loop_body
      %s30 = ssub.s32 %s25, 1
      %s31 = ssub.s32 %s25, 2
      %s32 = sadd.s32 %s25, 1
      %s33 = ssub.s32 %s25, %s32
      %p34 = scmp.eq.s32.totalorder %s33, 0
      %s36 = sadd.s32 %s35, 1
      %s37 = scalar_select %p34, %s35, %s36
      %p40 = pneg %p34
      %p41 = scmp.eq.s32.totalorder %s25, 1
      %p42 = por %p40, %p41
      %p43 = scmp.ne.s32.totalorder %s35, %s38
      %p44 = scmp.eq.s32.totalorder %s25, 0
      %p45 = por %p43, %p44
      %p46 = scmp.ne.s32.totalorder %s35, %s38
      %p47 = scmp.eq.s32.totalorder %s30, 1
      %p48 = por %p46, %p47
      %p49 = scmp.ne.s32.totalorder %s38, %s39
      %p50 = scmp.eq.s32.totalorder %s30, 0
      %p51 = por %p49, %p50
      %p52 = scmp.ne.s32.totalorder %s38, %s39
      %p53 = scmp.eq.s32.totalorder %s31, 1
      %p54 = por %p52, %p53
      %p56 = scmp.ne.s32.totalorder %s39, %s55
      %p57 = scmp.eq.s32.totalorder %s31, 0
      %p58 = por %p56, %p57
      %s60 = sadd.s32 %s59, 1
      %p63 = scmp.eq.s32.totalorder %s25, 1
      %p64 = scmp.ne.s32.totalorder %s59, %s61
      %p65 = scmp.eq.s32.totalorder %s25, 0
      %p66 = por %p64, %p65
      %p67 = scmp.ne.s32.totalorder %s59, %s61
      %p68 = scmp.eq.s32.totalorder %s30, 1
      %p69 = por %p67, %p68
      %p70 = scmp.ne.s32.totalorder %s61, %s62
      %p71 = scmp.eq.s32.totalorder %s30, 0
      %p72 = por %p70, %p71
      %p73 = scmp.ne.s32.totalorder %s61, %s62
      %p74 = scmp.eq.s32.totalorder %s31, 1
      %p75 = por %p73, %p74
      %p77 = scmp.ne.s32.totalorder %s62, %s76
      %p78 = scmp.eq.s32.totalorder %s31, 0
      %p79 = por %p77, %p78
      %s81 = sadd.s32 %s80, 1
      %p84 = scmp.eq.s32.totalorder %s25, 1
      %p85 = scmp.ne.s32.totalorder %s80, %s82
      %p86 = scmp.eq.s32.totalorder %s25, 0
      %p87 = por %p85, %p86
      %p88 = scmp.ne.s32.totalorder %s80, %s82
      %p89 = scmp.eq.s32.totalorder %s30, 1
      %p90 = por %p88, %p89
      %p91 = scmp.ne.s32.totalorder %s82, %s83
      %p92 = scmp.eq.s32.totalorder %s30, 0
      %p93 = por %p91, %p92
      %p94 = scmp.ne.s32.totalorder %s82, %s83
      %p95 = scmp.eq.s32.totalorder %s31, 1
      %p96 = por %p94, %p95
      %p98 = scmp.ne.s32.totalorder %s83, %s97
      %p99 = scmp.eq.s32.totalorder %s31, 0
      %p100 = por %p98, %p99
      %s102 = sadd.s32 %s101, 1
      %p105 = scmp.eq.s32.totalorder %s25, 1
      %p106 = scmp.ne.s32.totalorder %s101, %s103
      %p107 = scmp.eq.s32.totalorder %s25, 0
      %p108 = por %p106, %p107
      %p109 = scmp.ne.s32.totalorder %s101, %s103
      %p110 = scmp.eq.s32.totalorder %s30, 1
      %p111 = por %p109, %p110
      %p112 = scmp.ne.s32.totalorder %s103, %s104
      %p113 = scmp.eq.s32.totalorder %s30, 0
      %p114 = por %p112, %p113
      %p115 = scmp.ne.s32.totalorder %s103, %s104
      %p116 = scmp.eq.s32.totalorder %s31, 1
      %p117 = por %p115, %p116
      %p119 = scmp.ne.s32.totalorder %s104, %s118
      %p120 = scmp.eq.s32.totalorder %s31, 0
      %p121 = por %p119, %p120
      %s123 = sadd.s32 %s122, 1
      %p126 = scmp.eq.s32.totalorder %s25, 1
      %p127 = scmp.ne.s32.totalorder %s122, %s124
      %p128 = scmp.eq.s32.totalorder %s25, 0
      %p129 = por %p127, %p128
      %p130 = scmp.ne.s32.totalorder %s122, %s124
      %p131 = scmp.eq.s32.totalorder %s30, 1
      %p132 = por %p130, %p131
      %p133 = scmp.ne.s32.totalorder %s124, %s125
      %p134 = scmp.eq.s32.totalorder %s30, 0
      %p135 = por %p133, %p134
      %p136 = scmp.ne.s32.totalorder %s124, %s125
      %p137 = scmp.eq.s32.totalorder %s31, 1
      %p138 = por %p136, %p137
      %p140 = scmp.ne.s32.totalorder %s125, %s139
      %p141 = scmp.eq.s32.totalorder %s31, 0
      %p142 = por %p140, %p141
      %s144 = sadd.s32 %s143, 1
      %p147 = scmp.eq.s32.totalorder %s25, 1
      %p148 = scmp.ne.s32.totalorder %s143, %s145
      %p149 = scmp.eq.s32.totalorder %s25, 0
      %p150 = por %p148, %p149
      %p151 = scmp.ne.s32.totalorder %s143, %s145
      %p152 = scmp.eq.s32.totalorder %s30, 1
      %p153 = por %p151, %p152
      %p154 = scmp.ne.s32.totalorder %s145, %s146
      %p155 = scmp.eq.s32.totalorder %s30, 0
      %p156 = por %p154, %p155
      %p157 = scmp.ne.s32.totalorder %s145, %s146
      %p158 = scmp.eq.s32.totalorder %s31, 1
      %p159 = por %p157, %p158
      %p161 = scmp.ne.s32.totalorder %s146, %s160
      %p162 = scmp.eq.s32.totalorder %s31, 0
      %p163 = por %p161, %p162
      %s165 = sadd.s32 %s164, 1
      %p168 = scmp.eq.s32.totalorder %s25, 1
      %p169 = scmp.ne.s32.totalorder %s164, %s166
      %p170 = scmp.eq.s32.totalorder %s25, 0
      %p171 = por %p169, %p170
      %p172 = scmp.ne.s32.totalorder %s164, %s166
      %p173 = scmp.eq.s32.totalorder %s30, 1
      %p174 = por %p172, %p173
      %p175 = scmp.ne.s32.totalorder %s166, %s167
      %p176 = scmp.eq.s32.totalorder %s30, 0
      %p177 = por %p175, %p176
      %p178 = scmp.ne.s32.totalorder %s166, %s167
      %p179 = scmp.eq.s32.totalorder %s31, 1
      %p180 = por %p178, %p179
      %p182 = scmp.ne.s32.totalorder %s167, %s181
      %p183 = scmp.eq.s32.totalorder %s31, 0
      %p184 = por %p182, %p183
      %s186 = sadd.s32 %s185, 1
      %p189 = scmp.eq.s32.totalorder %s25, 1
      %p190 = scmp.ne.s32.totalorder %s185, %s187
      %p191 = scmp.eq.s32.totalorder %s25, 0
      %p192 = por %p190, %p191
      %p193 = scmp.ne.s32.totalorder %s185, %s187
      %p194 = scmp.eq.s32.totalorder %s30, 1
      %p195 = por %p193, %p194
      %p196 = scmp.ne.s32.totalorder %s187, %s188
      %p197 = scmp.eq.s32.totalorder %s30, 0
      %p198 = por %p196, %p197
      %p199 = scmp.ne.s32.totalorder %s187, %s188
      %p200 = scmp.eq.s32.totalorder %s31, 1
      %p201 = por %p199, %p200
      %p203 = scmp.ne.s32.totalorder %s188, %s202
      %p204 = scmp.eq.s32.totalorder %s31, 0
      %p205 = por %p203, %p204
      %s207 = sadd.s32 %s206, 1
      %p210 = scmp.eq.s32.totalorder %s25, 1
      %p211 = scmp.ne.s32.totalorder %s206, %s208
      %p212 = scmp.eq.s32.totalorder %s25, 0
      %p213 = por %p211, %p212
      %p214 = scmp.ne.s32.totalorder %s206, %s208
      %p215 = scmp.eq.s32.totalorder %s30, 1
      %p216 = por %p214, %p215
      %p217 = scmp.ne.s32.totalorder %s208, %s209
      %p218 = scmp.eq.s32.totalorder %s30, 0
      %p219 = por %p217, %p218
      %p220 = scmp.ne.s32.totalorder %s208, %s209
      %p221 = scmp.eq.s32.totalorder %s31, 1
      %p222 = por %p220, %p221
      %p224 = scmp.ne.s32.totalorder %s209, %s223
      %p225 = scmp.eq.s32.totalorder %s31, 0
      %p226 = por %p224, %p225
      %s227 = ssub.s32 %s25, %s32
      %p228 = scmp.eq.s32.totalorder %s227, 0
      %s230 = sadd.s32 %s229, 1
      %s231 = scalar_select %p228, %s229, %s230
      %p234 = pneg %p228
      %p235 = scmp.eq.s32.totalorder %s25, 1
      %p236 = por %p234, %p235
      %p237 = scmp.ne.s32.totalorder %s229, %s232
      %p238 = scmp.eq.s32.totalorder %s25, 0
      %p239 = por %p237, %p238
      %p240 = scmp.ne.s32.totalorder %s229, %s232
      %p241 = scmp.eq.s32.totalorder %s30, 1
      %p242 = por %p240, %p241
      %p243 = scmp.ne.s32.totalorder %s232, %s233
      %p244 = scmp.eq.s32.totalorder %s30, 0
      %p245 = por %p243, %p244
      %p246 = scmp.ne.s32.totalorder %s232, %s233
      %p247 = scmp.eq.s32.totalorder %s31, 1
      %p248 = por %p246, %p247
      %p250 = scmp.ne.s32.totalorder %s233, %s249
      %p251 = scmp.eq.s32.totalorder %s31, 0
      %p252 = por %p250, %p251
      %p253 = scmp.le.s32.totalorder 1, %s25
      %p254 = scmp.lt.s32.totalorder %s25, 3
      %p255 = pnand %p253, %p254
      %p256 = pneg %p255
      // Predicated region
      $region9: #{tpu_custom_call.1} parent=5 // pred_check
        _
      $region10: #{tpu_custom_call.1} parent=5 // pred_check_branch
        %258 = sbr.rel (%p255) target = $region12
      $region11: #{tpu_custom_call.1} parent=5 // pred_region
        %s259 = ssub.s32 %s25, 1
        // Predicated region
        $region13: #{tpu_custom_call.1} parent=11 // pred_check
          %p260 = pneg %p72
        $region14: #{tpu_custom_call.1} parent=11 // pred_check_branch
          %262 = sbr.rel (%p260) target = $region16
        $region15: #{tpu_custom_call.1} parent=11 // pred_region
          %s264 = ssub.s32 1024, 1024
          %265 = vsyncadd [#allocation6], %s264
          %s266 = sshll.u32 [#allocation5], 4
          %s267 = int_to_ptr.vmem [resolvable:$true] %s266
          %272 = dma.hbm_to_vmem [thread:$0]  %s1, 1024, %s267, [#allocation6], 128, 128, 8
        $region16: #{tpu_custom_call.1} parent=11 // pred_fallthru
          _
        // Predicated region
        $region17: #{tpu_custom_call.1} parent=11 // pred_check
          %p273 = pneg %p93
        $region18: #{tpu_custom_call.1} parent=11 // pred_check_branch
          %275 = sbr.rel (%p273) target = $region20
        $region19: #{tpu_custom_call.1} parent=11 // pred_region
          %s277 = ssub.s32 6144, 6144
          %278 = vsyncadd [#allocation6], %s277
          %s279 = sshll.u32 [#allocation7], 4
          %s280 = int_to_ptr.vmem [resolvable:$true] %s279
          %285 = dma.hbm_to_vmem [thread:$0]  %s2, 6144, %s280, [#allocation6], 128, 128, 8
        $region20: #{tpu_custom_call.1} parent=11 // pred_fallthru
          _
        // Predicated region
        $region21: #{tpu_custom_call.1} parent=11 // pred_check
          %p286 = pneg %p114
        $region22: #{tpu_custom_call.1} parent=11 // pred_check_branch
          %288 = sbr.rel (%p286) target = $region24
        $region23: #{tpu_custom_call.1} parent=11 // pred_region
          %s290 = ssub.s32 2048, 2048
          %291 = vsyncadd [#allocation9], %s290
          %s292 = sshll.u32 [#allocation8], 4
          %s293 = int_to_ptr.vmem [resolvable:$true] %s292
          %298 = dma.hbm_to_vmem [thread:$0]  %s3, 2048, %s293, [#allocation9], 128, 128, 8
        $region24: #{tpu_custom_call.1} parent=11 // pred_fallthru
          _
        // Predicated region
        $region25: #{tpu_custom_call.1} parent=11 // pred_check
          %p299 = pneg %p135
        $region26: #{tpu_custom_call.1} parent=11 // pred_check_branch
          %301 = sbr.rel (%p299) target = $region28
        $region27: #{tpu_custom_call.1} parent=11 // pred_region
          %s303 = ssub.s32 2048, 2048
          %304 = vsyncadd [#allocation9], %s303
          %s305 = sshll.u32 [#allocation10], 4
          %s306 = int_to_ptr.vmem [resolvable:$true] %s305
          %311 = dma.hbm_to_vmem [thread:$0]  %s4, 2048, %s306, [#allocation9], 128, 128, 8
        $region28: #{tpu_custom_call.1} parent=11 // pred_fallthru
          _
        // Predicated region
        $region29: #{tpu_custom_call.1} parent=11 // pred_check
          %p312 = pneg %p156
        $region30: #{tpu_custom_call.1} parent=11 // pred_check_branch
          %314 = sbr.rel (%p312) target = $region32
        $region31: #{tpu_custom_call.1} parent=11 // pred_region
          %s316 = ssub.s32 6144, 6144
          %317 = vsyncadd [#allocation12], %s316
          %s318 = sshll.u32 [#allocation11], 4
          %s319 = int_to_ptr.vmem [resolvable:$true] %s318
          %324 = dma.hbm_to_vmem [thread:$0]  %s5, 6144, %s319, [#allocation12], 128, 128, 8
        $region32: #{tpu_custom_call.1} parent=11 // pred_fallthru
          _
        // Predicated region
        $region33: #{tpu_custom_call.1} parent=11 // pred_check
          %p325 = pneg %p177
        $region34: #{tpu_custom_call.1} parent=11 // pred_check_branch
          %327 = sbr.rel (%p325) target = $region36
        $region35: #{tpu_custom_call.1} parent=11 // pred_region
          %s329 = ssub.s32 2048, 2048
          %330 = vsyncadd [#allocation12], %s329
          %s331 = sshll.u32 [#allocation13], 4
          %s332 = int_to_ptr.vmem [resolvable:$true] %s331
          %337 = dma.hbm_to_vmem [thread:$0]  %s6, 2048, %s332, [#allocation12], 128, 128, 8
        $region36: #{tpu_custom_call.1} parent=11 // pred_fallthru
          _
        // Predicated region
        $region37: #{tpu_custom_call.1} parent=11 // pred_check
          %p338 = pneg %p198
        $region38: #{tpu_custom_call.1} parent=11 // pred_check_branch
          %340 = sbr.rel (%p338) target = $region40
        $region39: #{tpu_custom_call.1} parent=11 // pred_region
          _
        $region40: #{tpu_custom_call.1} parent=11 // pred_fallthru
          _
        // Predicated region
        $region41: #{tpu_custom_call.1} parent=11 // pred_check
          %p341 = pneg %p219
        $region42: #{tpu_custom_call.1} parent=11 // pred_check_branch
          %343 = sbr.rel (%p341) target = $region44
        $region43: #{tpu_custom_call.1} parent=11 // pred_region
          %s345 = ssub.s32 128, 128
          %346 = vsyncadd [#allocation15], %s345
          %s348 = sshll.u32 [#allocation14], 4
          %s349 = int_to_ptr.vmem [resolvable:$true] %s348
          %351 = dma.hbm_to_vmem [thread:$0]  %s8, 128, %s349, [#allocation15]
        $region44: #{tpu_custom_call.1} parent=11 // pred_fallthru
          _
      $region12: #{tpu_custom_call.1} parent=5 // pred_fallthru
        _
      %p352 = scmp.lt.s32.totalorder %s25, 2
      // Predicated region
      $region45: #{tpu_custom_call.1} parent=5 // pred_check
        %p353 = pneg %p352
      $region46: #{tpu_custom_call.1} parent=5 // pred_check_branch
        %355 = sbr.rel (%p353) target = $region48
      $region47: #{tpu_custom_call.1} parent=5 // pred_region
        // Predicated region
        $region49: #{tpu_custom_call.1} parent=47 // pred_check
          %p356 = pneg %p45
        $region50: #{tpu_custom_call.1} parent=47 // pred_check_branch
          %358 = sbr.rel (%p356) target = $region52
        $region51: #{tpu_custom_call.1} parent=47 // pred_region
          %s359 = sand.u32 %s35, 1
          %s360 = scalar_lea.sflag [#allocation3], %s359
          %s361 = sand.u32 %s35, 1
          %s362 = smul.addr %s361, 32
          %s363 = scalar_lea.vmem [#allocation2], %s362
          %s364 = smul.u32 2, %s25
          %s366 = ssub.s32 512, 512
          %367 = vsyncadd %s360, %s366
          %s368 = smul.addr %s364, 2
          %s369 = smul.addr %s368, 128
          %s370 = scalar_lea.hbm %s0, %s369
          %s371 = sshll.u32 %s363, 4
          %s372 = int_to_ptr.vmem [resolvable:$true] %s371
          %377 = dma.hbm_to_vmem [thread:$0]  %s370, 512, %s372, %s360, 128, 128, 8
        $region52: #{tpu_custom_call.1} parent=47 // pred_fallthru
          _
      $region48: #{tpu_custom_call.1} parent=5 // pred_fallthru
        _
      %p378 = scmp.le.s32.totalorder 1, %s25
      %p379 = scmp.lt.s32.totalorder %s25, 3
      %p380 = pnand %p378, %p379
      %p381 = pneg %p380
      // Predicated region
      $region53: #{tpu_custom_call.1} parent=5 // pred_check
        _
      $region54: #{tpu_custom_call.1} parent=5 // pred_check_branch
        %383 = sbr.rel (%p380) target = $region56
      $region55: #{tpu_custom_call.1} parent=5 // pred_region
        %s384 = ssub.s32 %s25, 1
        %s385 = sand.u32 %s38, 1
        %s386 = scalar_lea.sflag [#allocation3], %s385
        %s387 = sand.u32 %s38, 1
        %s388 = smul.addr %s387, 32
        %s389 = scalar_lea.vmem [#allocation2], %s388
        // Predicated region
        $region57: #{tpu_custom_call.1} parent=55 // pred_check
          %p390 = pneg %p51
        $region58: #{tpu_custom_call.1} parent=55 // pred_check_branch
          %392 = sbr.rel (%p390) target = $region60
        $region59: #{tpu_custom_call.1} parent=55 // pred_region
          %393 = dma.done %s386, 512
        $region60: #{tpu_custom_call.1} parent=55 // pred_fallthru
          _
        // Predicated region
        $region61: #{tpu_custom_call.1} parent=55 // pred_check
          %p394 = pneg %p72
        $region62: #{tpu_custom_call.1} parent=55 // pred_check_branch
          %396 = sbr.rel (%p394) target = $region64
        $region63: #{tpu_custom_call.1} parent=55 // pred_region
          %397 = dma.done [#allocation6], 1024
        $region64: #{tpu_custom_call.1} parent=55 // pred_fallthru
          _
        // Predicated region
        $region65: #{tpu_custom_call.1} parent=55 // pred_check
          %p398 = pneg %p93
        $region66: #{tpu_custom_call.1} parent=55 // pred_check_branch
          %400 = sbr.rel (%p398) target = $region68
        $region67: #{tpu_custom_call.1} parent=55 // pred_region
          %401 = dma.done [#allocation6], 6144
        $region68: #{tpu_custom_call.1} parent=55 // pred_fallthru
          _
        // Predicated region
        $region69: #{tpu_custom_call.1} parent=55 // pred_check
          %p402 = pneg %p114
        $region70: #{tpu_custom_call.1} parent=55 // pred_check_branch
          %404 = sbr.rel (%p402) target = $region72
        $region71: #{tpu_custom_call.1} parent=55 // pred_region
          %405 = dma.done [#allocation9], 2048
        $region72: #{tpu_custom_call.1} parent=55 // pred_fallthru
          _
        // Predicated region
        $region73: #{tpu_custom_call.1} parent=55 // pred_check
          %p406 = pneg %p135
        $region74: #{tpu_custom_call.1} parent=55 // pred_check_branch
          %408 = sbr.rel (%p406) target = $region76
        $region75: #{tpu_custom_call.1} parent=55 // pred_region
          %409 = dma.done [#allocation9], 2048
        $region76: #{tpu_custom_call.1} parent=55 // pred_fallthru
          _
        // Predicated region
        $region77: #{tpu_custom_call.1} parent=55 // pred_check
          %p410 = pneg %p156
        $region78: #{tpu_custom_call.1} parent=55 // pred_check_branch
          %412 = sbr.rel (%p410) target = $region80
        $region79: #{tpu_custom_call.1} parent=55 // pred_region
          %413 = dma.done [#allocation12], 6144
        $region80: #{tpu_custom_call.1} parent=55 // pred_fallthru
          _
        // Predicated region
        $region81: #{tpu_custom_call.1} parent=55 // pred_check
          %p414 = pneg %p177
        $region82: #{tpu_custom_call.1} parent=55 // pred_check_branch
          %416 = sbr.rel (%p414) target = $region84
        $region83: #{tpu_custom_call.1} parent=55 // pred_region
          %417 = dma.done [#allocation12], 2048
        $region84: #{tpu_custom_call.1} parent=55 // pred_fallthru
          _
        // Predicated region
        $region85: #{tpu_custom_call.1} parent=55 // pred_check
          %p418 = pneg %p219
        $region86: #{tpu_custom_call.1} parent=55 // pred_check_branch
          %420 = sbr.rel (%p418) target = $region88
        $region87: #{tpu_custom_call.1} parent=55 // pred_region
          %421 = dma.done [#allocation15], 128
        $region88: #{tpu_custom_call.1} parent=55 // pred_fallthru
          _
        %s422 = sand.u32 %s38, 1
        %s423 = scalar_lea.sflag [#allocation3], %s422
        %s424 = sand.u32 %s38, 1
        %s425 = smul.addr %s424, 32
        %s426 = scalar_lea.vmem [#allocation2], %s425
        %p427 = pneg %p51
        %p428 = pneg %p48
        %p429 = pneg %p72
        %p430 = pneg %p69
        %p431 = pneg %p93
        %p432 = pneg %p90
        %p433 = pneg %p114
        %p434 = pneg %p111
        %p435 = pneg %p135
        %p436 = pneg %p132
        %p437 = pneg %p156
        %p438 = pneg %p153
        %p439 = pneg %p177
        %p440 = pneg %p174
        %p441 = pneg %p198
        %p442 = pneg %p195
        %p443 = pneg %p219
        %p444 = pneg %p216
        %p445 = pneg %p245
        %p446 = pneg %p242
        %s447 = sand.u32 %s232, 1
        %s448 = scalar_lea.sflag [#allocation4], %s447
        %s449 = sand.u32 %s232, 1
        %s450 = smul.addr %s449, 32
        %s451 = scalar_lea.vmem [#allocation16], %s450
        %s452 = smul.u32 2, %s30
        %s453 = smul.u32 2, %s30
        %v454 = vlaneseq
        %v455 = vshrl.u32 %v454, 7
        %v456 = vadd.s32 %v455, 8
        %v457 = vadd.s32 %v455, 16
        %v458 = vadd.s32 %v455, 24
        %vm459 = vcmp.lt.s32.totalorder %v455, 0
        %v460 = vsub.s32 0, %v455
        %v461 = vsel %vm459, %v460, %v455
        %v462 = vshrl.u32 %v461, 4
        %v463 = vand.u32 %v461, 15
        %v464 = vsub.s32 0, %v463
        %v465 = vsel %vm459, %v464, %v463
        %vm466 = vcmp.lt.s32.totalorder %v456, 0
        %v467 = vsub.s32 0, %v456
        %v468 = vsel %vm466, %v467, %v456
        %v469 = vshrl.u32 %v468, 4
        %v470 = vand.u32 %v468, 15
        %v471 = vsub.s32 0, %v470
        %v472 = vsel %vm466, %v471, %v470
        %vm473 = vcmp.lt.s32.totalorder %v457, 0
        %v474 = vsub.s32 0, %v457
        %v475 = vsel %vm473, %v474, %v457
        %v476 = vshrl.u32 %v475, 4
        %v477 = vand.u32 %v475, 15
        %v478 = vsub.s32 0, %v477
        %v479 = vsel %vm473, %v478, %v477
        %vm480 = vcmp.lt.s32.totalorder %v458, 0
        %v481 = vsub.s32 0, %v458
        %v482 = vsel %vm480, %v481, %v458
        %v483 = vshrl.u32 %v482, 4
        %v484 = vand.u32 %v482, 15
        %v485 = vsub.s32 0, %v484
        %v486 = vsel %vm480, %v485, %v484
        %vm487 = vcmp.ne.s32.totalorder %v465, 0
        %vm488 = vcmp.ne.s32.totalorder %v472, 0
        %vm489 = vcmp.ne.s32.totalorder %v479, 0
        %vm490 = vcmp.ne.s32.totalorder %v486, 0
        %vm491 = vcmp.lt.s32.totalorder %v465, 0
        %vm492 = vcmp.lt.s32.totalorder %v472, 0
        %vm493 = vcmp.lt.s32.totalorder %v479, 0
        %vm494 = vcmp.lt.s32.totalorder %v486, 0
        %vm495 = vmand %vm491, %vm487
        %vm496 = vmand %vm492, %vm488
        %vm497 = vmand %vm493, %vm489
        %vm498 = vmand %vm494, %vm490
        %v499 = vadd.s32 %v465, 16
        %v500 = vadd.s32 %v472, 16
        %v501 = vadd.s32 %v479, 16
        %v502 = vadd.s32 %v486, 16
        %v503 = vsel %vm495, %v499, %v465
        %v504 = vsel %vm496, %v500, %v472
        %v505 = vsel %vm497, %v501, %v479
        %v506 = vsel %vm498, %v502, %v486
        %vm507 = vcmp.ne.s32.totalorder %v503, 0
        %vm508 = vcmp.ne.s32.totalorder %v504, 0
        %vm509 = vcmp.ne.s32.totalorder %v505, 0
        %vm510 = vcmp.ne.s32.totalorder %v506, 0
        %v511 = vsel %vm507, 1, 0
        %v512 = vsel %vm508, 1, 0
        %v513 = vsel %vm509, 1, 0
        %v514 = vsel %vm510, 1, 0
        %v515 = vcvt.s32.f32 %v511
        %v516 = vcvt.s32.f32 %v512
        %v517 = vcvt.s32.f32 %v513
        %v518 = vcvt.s32.f32 %v514
        %vm519 = vcmp.ne.s32.totalorder %v503, 15
        %vm520 = vcmp.ne.s32.totalorder %v504, 15
        %vm521 = vcmp.ne.s32.totalorder %v505, 15
        %vm522 = vcmp.ne.s32.totalorder %v506, 15
        %v523 = vsel %vm519, 1, 0
        %v524 = vsel %vm520, 1, 0
        %v525 = vsel %vm521, 1, 0
        %v526 = vsel %vm522, 1, 0
        %v527 = vcvt.s32.f32 %v523
        %v528 = vcvt.s32.f32 %v524
        %v529 = vcvt.s32.f32 %v525
        %v530 = vcvt.s32.f32 %v526
        %v531 = vld [vmem:[%s389] sm:$0xff]
        %v532 = vld [vmem:[%s389 + $0x8] sm:$0xff]
        %v533 = vld [vmem:[%s389 + $0x10] sm:$0xff]
        %v534 = vld [vmem:[%s389 + $0x18] sm:$0xff]
        %v535 = vld [vmem:[#allocation5] sm:$0xff]
        %v536 = vld [vmem:[#allocation5 + $0x8] sm:$0xff]
        %v537 = vld [vmem:[#allocation5 + $0x10] sm:$0xff]
        %v538 = vld [vmem:[#allocation5 + $0x18] sm:$0xff]
        %v539 = vld [vmem:[#allocation5 + $0x20] sm:$0xff]
        %v540 = vld [vmem:[#allocation5 + $0x28] sm:$0xff]
        %v541 = vld [vmem:[#allocation5 + $0x30] sm:$0xff]
        %v542 = vld [vmem:[#allocation5 + $0x38] sm:$0xff]
        %v543 = vld [vmem:[%s7] sm:$0x1]
        %v544 = vlaneseq
        %v545 = vshrl.u32 %v544, 7
        %v546 = vsub.s32 0, %v545
        %v547 = vrot.slane %v543, %v546
        %vm548 = vcmask 523264
        %v550 = vsel %vm548, %v531, 0
        %v553 = vsel %vm548, %v532, 0
        %v556 = vsel %vm548, %v533, 0
        %v559 = vsel %vm548, %v534, 0
        %561 = vmatprep.subr.mxu0 0.0
        %562 = vmatpush1.msra.mxu0 0.0
        %563 = vmatprep.subr.mxu0 0.0
        %564 = vmatpush1.msra.mxu0 0.0
        %565 = vmatprep.subr.mxu0 0.0
        %566 = vmatpush1.msra.mxu0 0.0
        %567 = vmatprep.subr.mxu0 0.0
        %568 = vmatpush1.msra.mxu0 0.0
        %569 = vmatprep.subr.mxu0 0.0
        %570 = vmatpush1.msra.mxu0 0.0
        %571 = vmatprep.subr.mxu0 0.0
        %572 = vmatpush1.msra.mxu0 0.0
        %573 = vmatprep.subr.mxu0 0.0
        %574 = vmatpush1.msra.mxu0 0.0
        %575 = vmatprep.subr.mxu0 0.0
        %576 = vmatpush1.msra.mxu0 0.0
        %577 = vmatprep.subr.mxu0 0.0
        %578 = vmatpush1.msra.mxu0 %v542
        %579 = vmatprep.subr.mxu0 0.0
        %580 = vmatpush1.msra.mxu0 %v541
        %581 = vmatprep.subr.mxu0 0.0
        %582 = vmatpush1.msra.mxu0 %v540
        %583 = vmatprep.subr.mxu0 0.0
        %584 = vmatpush1.msra.mxu0 %v539
        %585 = vmatprep.subr.mxu0 0.0
        %586 = vmatpush1.msra.mxu0 %v538
        %587 = vmatprep.subr.mxu0 0.0
        %588 = vmatpush1.msra.mxu0 %v537
        %589 = vmatprep.subr.mxu0 0.0
        %590 = vmatpush1.msra.mxu0 %v536
        %591 = vmatprep.subr.mxu0 0.0
        %592 = vmatpush1.msra.mxu0 %v535
        %593 = vmatprep.subr.mxu0 0.0
        %594 = vmatpush2.msra.mxu0 0.0
        %595 = vmatprep.subr.mxu0 0.0
        %596 = vmatpush2.msra.mxu0 0.0
        %597 = vmatprep.subr.mxu0 0.0
        %598 = vmatpush2.msra.mxu0 0.0
        %599 = vmatprep.subr.mxu0 0.0
        %600 = vmatpush2.msra.mxu0 0.0
        %601 = vmatprep.subr.mxu0 0.0
        %602 = vmatpush2.msra.mxu0 0.0
        %603 = vmatprep.subr.mxu0 0.0
        %604 = vmatpush2.msra.mxu0 0.0
        %605 = vmatprep.subr.mxu0 0.0
        %606 = vmatpush2.msra.mxu0 0.0
        %607 = vmatprep.subr.mxu0 0.0
        %608 = vmatpush2.msra.mxu0 0.0
        %609 = vmatprep.subr.mxu0 0.0
        %610 = vmatpush2.msra.mxu0 0.0
        %611 = vmatprep.subr.mxu0 0.0
        %612 = vmatpush2.msra.mxu0 0.0
        %613 = vmatprep.subr.mxu0 0.0
        %614 = vmatpush2.msra.mxu0 0.0
        %615 = vmatprep.subr.mxu0 0.0
        %616 = vmatpush2.msra.mxu0 0.0
        %617 = vmatprep.subr.mxu0 0.0
        %618 = vmatpush2.msra.mxu0 0.0
        %619 = vmatprep.subr.mxu0 0.0
        %620 = vmatpush2.msra.mxu0 0.0
        %621 = vmatprep.subr.mxu0 0.0
        %622 = vmatpush2.msra.mxu0 0.0
        %623 = vmatprep.subr.mxu0 0.0
        %624 = vmatpush2.msra.mxu0 0.0
        %625 = vmatprep.mubr.f32.mxu0 0.0
        %626 = vmatmul.mubr.f32.gmra.mxu0 %v550
        %v627 = vpop.f32.mrf.mxu0
        %v628 = vadd.f32 %v547, %v627
        %v629 = vpop.f32.mrf.mxu0
        %630 = vmatprep.mubr.f32.mxu0 0.0
        %631 = vmatmul.mubr.f32.gmra.mxu0 %v553
        %v632 = vpop.f32.mrf.mxu0
        %v633 = vadd.f32 %v547, %v632
        %v634 = vpop.f32.mrf.mxu0
        %635 = vmatprep.mubr.f32.mxu0 0.0
        %636 = vmatmul.mubr.f32.gmra.mxu0 %v556
        %v637 = vpop.f32.mrf.mxu0
        %v638 = vadd.f32 %v547, %v637
        %v639 = vpop.f32.mrf.mxu0
        %640 = vmatprep.mubr.f32.mxu0 0.0
        %641 = vmatmul.mubr.f32.gmra.mxu0 %v559
        %v642 = vpop.f32.mrf.mxu0
        %v643 = vadd.f32 %v547, %v642
        %v644 = vpop.f32.mrf.mxu0
        %645 = vdwg.mxu0
        %vm646 = vcmp.ge.f32.partialorder %v628, 0.0
        %vm647 = vcmp.ge.f32.partialorder %v633, 0.0
        %vm648 = vcmp.ge.f32.partialorder %v638, 0.0
        %vm649 = vcmp.ge.f32.partialorder %v643, 0.0
        %v650 = vld [vmem:[#allocation14] sm:$0x1]
        %v651 = vlaneseq
        %v652 = vshrl.u32 %v651, 7
        %v653 = vsub.s32 0, %v652
        %v654 = vrot.slane %v650, %v653
        %v655 = vmul.f32 %v654, %v628
        %v656 = vmul.f32 %v654, %v633
        %v657 = vmul.f32 %v654, %v638
        %v658 = vmul.f32 %v654, %v643
        %v659 = vsel %vm646, %v628, %v655
        %v660 = vsel %vm647, %v633, %v656
        %v661 = vsel %vm648, %v638, %v657
        %v662 = vsel %vm649, %v643, %v658
        %v663 = vrot.slane %v659, 7
        %v664 = vrot.slane %v660, 7
        %v665 = vrot.slane %v661, 7
        %v666 = vrot.slane %v662, 7
        %vm667 = vcmp.lt.s32.totalorder %v455, 1
        %v668 = vsel %vm667, %v665, %v666
        %v669 = vsel %vm667, %v664, %v665
        %v670 = vsel %vm667, %v663, %v664
        %v671 = vsel %vm667, %v666, %v663
        %v672 = vmul.f32 %v671, %v515
        %v673 = vmul.f32 %v670, %v516
        %v674 = vmul.f32 %v669, %v517
        %v675 = vmul.f32 %v668, %v518
        %v676 = vrot.slane %v659, 1
        %v677 = vrot.slane %v660, 1
        %v678 = vrot.slane %v661, 1
        %v679 = vrot.slane %v662, 1
        %vm680 = vcmp.lt.s32.totalorder %v455, 7
        %v681 = vsel %vm680, %v678, %v679
        %v682 = vsel %vm680, %v677, %v678
        %v683 = vsel %vm680, %v676, %v677
        %v684 = vsel %vm680, %v679, %v676
        %v685 = vmul.f32 %v683, %v527
        %v686 = vmul.f32 %v682, %v528
        %v687 = vmul.f32 %v681, %v529
        %v688 = vmul.f32 %v684, %v530
        %v689 = vld [vmem:[#allocation7] sm:$0xff]
        %v690 = vld [vmem:[#allocation7 + $0x8] sm:$0xff]
        %v691 = vld [vmem:[#allocation7 + $0x10] sm:$0xff]
        %v692 = vld [vmem:[#allocation7 + $0x18] sm:$0xff]
        %v693 = vld [vmem:[#allocation7 + $0x20] sm:$0xff]
        %v694 = vld [vmem:[#allocation7 + $0x28] sm:$0xff]
        %v695 = vld [vmem:[#allocation7 + $0x30] sm:$0xff]
        %v696 = vld [vmem:[#allocation7 + $0x38] sm:$0xff]
        %v697 = vld [vmem:[#allocation7 + $0x40] sm:$0xff]
        %v698 = vld [vmem:[#allocation7 + $0x48] sm:$0xff]
        %v699 = vld [vmem:[#allocation7 + $0x50] sm:$0xff]
        %v700 = vld [vmem:[#allocation7 + $0x58] sm:$0xff]
        %v701 = vld [vmem:[#allocation7 + $0x60] sm:$0xff]
        %v702 = vld [vmem:[#allocation7 + $0x68] sm:$0xff]
        %v703 = vld [vmem:[#allocation7 + $0x70] sm:$0xff]
        %v704 = vld [vmem:[#allocation7 + $0x78] sm:$0xff]
        %v705 = vld [vmem:[#allocation7 + $0x80] sm:$0xff]
        %v706 = vld [vmem:[#allocation7 + $0x88] sm:$0xff]
        %v707 = vld [vmem:[#allocation7 + $0x90] sm:$0xff]
        %v708 = vld [vmem:[#allocation7 + $0x98] sm:$0xff]
        %v709 = vld [vmem:[#allocation7 + $0xa0] sm:$0xff]
        %v710 = vld [vmem:[#allocation7 + $0xa8] sm:$0xff]
        %v711 = vld [vmem:[#allocation7 + $0xb0] sm:$0xff]
        %v712 = vld [vmem:[#allocation7 + $0xb8] sm:$0xff]
        %v713 = vld [vmem:[#allocation7 + $0xc0] sm:$0xff]
        %v714 = vld [vmem:[#allocation7 + $0xc8] sm:$0xff]
        %v715 = vld [vmem:[#allocation7 + $0xd0] sm:$0xff]
        %v716 = vld [vmem:[#allocation7 + $0xd8] sm:$0xff]
        %v717 = vld [vmem:[#allocation7 + $0xe0] sm:$0xff]
        %v718 = vld [vmem:[#allocation7 + $0xe8] sm:$0xff]
        %v719 = vld [vmem:[#allocation7 + $0xf0] sm:$0xff]
        %v720 = vld [vmem:[#allocation7 + $0xf8] sm:$0xff]
        %v721 = vld [vmem:[#allocation7 + $0x100] sm:$0xff]
        %v722 = vld [vmem:[#allocation7 + $0x108] sm:$0xff]
        %v723 = vld [vmem:[#allocation7 + $0x110] sm:$0xff]
        %v724 = vld [vmem:[#allocation7 + $0x118] sm:$0xff]
        %v725 = vld [vmem:[#allocation7 + $0x120] sm:$0xff]
        %v726 = vld [vmem:[#allocation7 + $0x128] sm:$0xff]
        %v727 = vld [vmem:[#allocation7 + $0x130] sm:$0xff]
        %v728 = vld [vmem:[#allocation7 + $0x138] sm:$0xff]
        %v729 = vld [vmem:[#allocation7 + $0x140] sm:$0xff]
        %v730 = vld [vmem:[#allocation7 + $0x148] sm:$0xff]
        %v731 = vld [vmem:[#allocation7 + $0x150] sm:$0xff]
        %v732 = vld [vmem:[#allocation7 + $0x158] sm:$0xff]
        %v733 = vld [vmem:[#allocation7 + $0x160] sm:$0xff]
        %v734 = vld [vmem:[#allocation7 + $0x168] sm:$0xff]
        %v735 = vld [vmem:[#allocation7 + $0x170] sm:$0xff]
        %v736 = vld [vmem:[#allocation7 + $0x178] sm:$0xff]
        %v737 = vld [vmem:[%s7 + $0x1] sm:$0x1]
        %v738 = vlaneseq
        %v739 = vshrl.u32 %v738, 7
        %v740 = vsub.s32 0, %v739
        %v741 = vrot.slane %v737, %v740
        %742 = vmatprep.subr.mxu0 0.0
        %743 = vmatpush1.msra.mxu0 %v704
        %744 = vmatprep.subr.mxu0 0.0
        %745 = vmatpush1.msra.mxu0 %v703
        %746 = vmatprep.subr.mxu0 0.0
        %747 = vmatpush1.msra.mxu0 %v702
        %748 = vmatprep.subr.mxu0 0.0
        %749 = vmatpush1.msra.mxu0 %v701
        %750 = vmatprep.subr.mxu0 0.0
        %751 = vmatpush1.msra.mxu0 %v700
        %752 = vmatprep.subr.mxu0 0.0
        %753 = vmatpush1.msra.mxu0 %v699
        %754 = vmatprep.subr.mxu0 0.0
        %755 = vmatpush1.msra.mxu0 %v698
        %756 = vmatprep.subr.mxu0 0.0
        %757 = vmatpush1.msra.mxu0 %v697
        %758 = vmatprep.subr.mxu0 0.0
        %759 = vmatpush1.msra.mxu0 %v696
        %760 = vmatprep.subr.mxu0 0.0
        %761 = vmatpush1.msra.mxu0 %v695
        %762 = vmatprep.subr.mxu0 0.0
        %763 = vmatpush1.msra.mxu0 %v694
        %764 = vmatprep.subr.mxu0 0.0
        %765 = vmatpush1.msra.mxu0 %v693
        %766 = vmatprep.subr.mxu0 0.0
        %767 = vmatpush1.msra.mxu0 %v692
        %768 = vmatprep.subr.mxu0 0.0
        %769 = vmatpush1.msra.mxu0 %v691
        %770 = vmatprep.subr.mxu0 0.0
        %771 = vmatpush1.msra.mxu0 %v690
        %772 = vmatprep.subr.mxu0 0.0
        %773 = vmatpush1.msra.mxu0 %v689
        %774 = vmatprep.subr.mxu0 0.0
        %775 = vmatpush2.msra.mxu0 %v720
        %776 = vmatprep.subr.mxu0 0.0
        %777 = vmatpush2.msra.mxu0 %v719
        %778 = vmatprep.subr.mxu0 0.0
        %779 = vmatpush2.msra.mxu0 %v718
        %780 = vmatprep.subr.mxu0 0.0
        %781 = vmatpush2.msra.mxu0 %v717
        %782 = vmatprep.subr.mxu0 0.0
        %783 = vmatpush2.msra.mxu0 %v716
        %784 = vmatprep.subr.mxu0 0.0
        %785 = vmatpush2.msra.mxu0 %v715
        %786 = vmatprep.subr.mxu0 0.0
        %787 = vmatpush2.msra.mxu0 %v714
        %788 = vmatprep.subr.mxu0 0.0
        %789 = vmatpush2.msra.mxu0 %v713
        %790 = vmatprep.subr.mxu0 0.0
        %791 = vmatpush2.msra.mxu0 %v712
        %792 = vmatprep.subr.mxu0 0.0
        %793 = vmatpush2.msra.mxu0 %v711
        %794 = vmatprep.subr.mxu0 0.0
        %795 = vmatpush2.msra.mxu0 %v710
        %796 = vmatprep.subr.mxu0 0.0
        %797 = vmatpush2.msra.mxu0 %v709
        %798 = vmatprep.subr.mxu0 0.0
        %799 = vmatpush2.msra.mxu0 %v708
        %800 = vmatprep.subr.mxu0 0.0
        %801 = vmatpush2.msra.mxu0 %v707
        %802 = vmatprep.subr.mxu0 0.0
        %803 = vmatpush2.msra.mxu0 %v706
        %804 = vmatprep.subr.mxu0 0.0
        %805 = vmatpush2.msra.mxu0 %v705
        %806 = vmatprep.mubr.f32.mxu0 %v659
        %807 = vmatmul.mubr.f32.gmra.mxu0 %v672
        %v808 = vpop.f32.mrf.mxu0
        %v809 = vadd.f32 %v741, %v808
        %v810 = vpop.f32.mrf.mxu0
        %811 = vmatprep.mubr.f32.mxu0 %v660
        %812 = vmatmul.mubr.f32.gmra.mxu0 %v673
        %v813 = vpop.f32.mrf.mxu0
        %v814 = vadd.f32 %v741, %v813
        %v815 = vpop.f32.mrf.mxu0
        %816 = vmatprep.mubr.f32.mxu0 %v661
        %817 = vmatmul.mubr.f32.gmra.mxu0 %v674
        %v818 = vpop.f32.mrf.mxu0
        %v819 = vadd.f32 %v741, %v818
        %v820 = vpop.f32.mrf.mxu0
        %821 = vmatprep.mubr.f32.mxu0 %v662
        %822 = vmatmul.mubr.f32.gmra.mxu0 %v675
        %v823 = vpop.f32.mrf.mxu0
        %v824 = vadd.f32 %v741, %v823
        %v825 = vpop.f32.mrf.mxu0
        %826 = vdwg.mxu0
        %827 = vmatprep.subr.mxu0 0.0
        %828 = vmatpush1.msra.mxu0 %v736
        %829 = vmatprep.subr.mxu0 0.0
        %830 = vmatpush1.msra.mxu0 %v735
        %831 = vmatprep.subr.mxu0 0.0
        %832 = vmatpush1.msra.mxu0 %v734
        %833 = vmatprep.subr.mxu0 0.0
        %834 = vmatpush1.msra.mxu0 %v733
        %835 = vmatprep.subr.mxu0 0.0
        %836 = vmatpush1.msra.mxu0 %v732
        %837 = vmatprep.subr.mxu0 0.0
        %838 = vmatpush1.msra.mxu0 %v731
        %839 = vmatprep.subr.mxu0 0.0
        %840 = vmatpush1.msra.mxu0 %v730
        %841 = vmatprep.subr.mxu0 0.0
        %842 = vmatpush1.msra.mxu0 %v729
        %843 = vmatprep.subr.mxu0 0.0
        %844 = vmatpush1.msra.mxu0 %v728
        %845 = vmatprep.subr.mxu0 0.0
        %846 = vmatpush1.msra.mxu0 %v727
        %847 = vmatprep.subr.mxu0 0.0
        %848 = vmatpush1.msra.mxu0 %v726
        %849 = vmatprep.subr.mxu0 0.0
        %850 = vmatpush1.msra.mxu0 %v725
        %851 = vmatprep.subr.mxu0 0.0
        %852 = vmatpush1.msra.mxu0 %v724
        %853 = vmatprep.subr.mxu0 0.0
        %854 = vmatpush1.msra.mxu0 %v723
        %855 = vmatprep.subr.mxu0 0.0
        %856 = vmatpush1.msra.mxu0 %v722
        %857 = vmatprep.subr.mxu0 0.0
        %858 = vmatpush1.msra.mxu0 %v721
        %859 = vmatprep.subr.mxu0 0.0
        %860 = vmatpush2.msra.mxu0 0.0
        %861 = vmatprep.subr.mxu0 0.0
        %862 = vmatpush2.msra.mxu0 0.0
        %863 = vmatprep.subr.mxu0 0.0
        %864 = vmatpush2.msra.mxu0 0.0
        %865 = vmatprep.subr.mxu0 0.0
        %866 = vmatpush2.msra.mxu0 0.0
        %867 = vmatprep.subr.mxu0 0.0
        %868 = vmatpush2.msra.mxu0 0.0
        %869 = vmatprep.subr.mxu0 0.0
        %870 = vmatpush2.msra.mxu0 0.0
        %871 = vmatprep.subr.mxu0 0.0
        %872 = vmatpush2.msra.mxu0 0.0
        %873 = vmatprep.subr.mxu0 0.0
        %874 = vmatpush2.msra.mxu0 0.0
        %875 = vmatprep.subr.mxu0 0.0
        %876 = vmatpush2.msra.mxu0 0.0
        %877 = vmatprep.subr.mxu0 0.0
        %878 = vmatpush2.msra.mxu0 0.0
        %879 = vmatprep.subr.mxu0 0.0
        %880 = vmatpush2.msra.mxu0 0.0
        %881 = vmatprep.subr.mxu0 0.0
        %882 = vmatpush2.msra.mxu0 0.0
        %883 = vmatprep.subr.mxu0 0.0
        %884 = vmatpush2.msra.mxu0 0.0
        %885 = vmatprep.subr.mxu0 0.0
        %886 = vmatpush2.msra.mxu0 0.0
        %887 = vmatprep.subr.mxu0 0.0
        %888 = vmatpush2.msra.mxu0 0.0
        %889 = vmatprep.subr.mxu0 0.0
        %890 = vmatpush2.msra.mxu0 0.0
        %891 = vmatprep.mubr.f32.mxu0 0.0
        %892 = vmatmul.mubr.f32.gmra.mxu0 %v685
        %v893 = vpop.f32.mrf.mxu0
        %v894 = vadd.f32 %v809, %v893
        %v895 = vpop.f32.mrf.mxu0
        %896 = vmatprep.mubr.f32.mxu0 0.0
        %897 = vmatmul.mubr.f32.gmra.mxu0 %v686
        %v898 = vpop.f32.mrf.mxu0
        %v899 = vadd.f32 %v814, %v898
        %v900 = vpop.f32.mrf.mxu0
        %901 = vmatprep.mubr.f32.mxu0 0.0
        %902 = vmatmul.mubr.f32.gmra.mxu0 %v687
        %v903 = vpop.f32.mrf.mxu0
        %v904 = vadd.f32 %v819, %v903
        %v905 = vpop.f32.mrf.mxu0
        %906 = vmatprep.mubr.f32.mxu0 0.0
        %907 = vmatmul.mubr.f32.gmra.mxu0 %v688
        %v908 = vpop.f32.mrf.mxu0
        %v909 = vadd.f32 %v824, %v908
        %v910 = vpop.f32.mrf.mxu0
        %911 = vdwg.mxu0
        %vm912 = vcmp.ge.f32.partialorder %v894, 0.0
        %vm913 = vcmp.ge.f32.partialorder %v899, 0.0
        %vm914 = vcmp.ge.f32.partialorder %v904, 0.0
        %vm915 = vcmp.ge.f32.partialorder %v909, 0.0
        %v916 = vld [vmem:[#allocation14 + $0x1] sm:$0x1]
        %v917 = vlaneseq
        %v918 = vshrl.u32 %v917, 7
        %v919 = vsub.s32 0, %v918
        %v920 = vrot.slane %v916, %v919
        %v921 = vmul.f32 %v920, %v894
        %v922 = vmul.f32 %v920, %v899
        %v923 = vmul.f32 %v920, %v904
        %v924 = vmul.f32 %v920, %v909
        %v925 = vsel %vm912, %v894, %v921
        %v926 = vsel %vm913, %v899, %v922
        %v927 = vsel %vm914, %v904, %v923
        %v928 = vsel %vm915, %v909, %v924
        %v929 = vld [vmem:[#allocation8] sm:$0xff]
        %v930 = vld [vmem:[#allocation8 + $0x8] sm:$0xff]
        %v931 = vld [vmem:[#allocation8 + $0x10] sm:$0xff]
        %v932 = vld [vmem:[#allocation8 + $0x18] sm:$0xff]
        %v933 = vld [vmem:[#allocation8 + $0x20] sm:$0xff]
        %v934 = vld [vmem:[#allocation8 + $0x28] sm:$0xff]
        %v935 = vld [vmem:[#allocation8 + $0x30] sm:$0xff]
        %v936 = vld [vmem:[#allocation8 + $0x38] sm:$0xff]
        %v937 = vld [vmem:[#allocation8 + $0x40] sm:$0xff]
        %v938 = vld [vmem:[#allocation8 + $0x48] sm:$0xff]
        %v939 = vld [vmem:[#allocation8 + $0x50] sm:$0xff]
        %v940 = vld [vmem:[#allocation8 + $0x58] sm:$0xff]
        %v941 = vld [vmem:[#allocation8 + $0x60] sm:$0xff]
        %v942 = vld [vmem:[#allocation8 + $0x68] sm:$0xff]
        %v943 = vld [vmem:[#allocation8 + $0x70] sm:$0xff]
        %v944 = vld [vmem:[#allocation8 + $0x78] sm:$0xff]
        %v945 = vld [vmem:[%s7 + $0x2] sm:$0x1]
        %v946 = vlaneseq
        %v947 = vshrl.u32 %v946, 7
        %v948 = vsub.s32 0, %v947
        %v949 = vrot.slane %v945, %v948
        %950 = vmatprep.subr.mxu0 0.0
        %951 = vmatpush1.msra.mxu0 %v944
        %952 = vmatprep.subr.mxu0 0.0
        %953 = vmatpush1.msra.mxu0 %v943
        %954 = vmatprep.subr.mxu0 0.0
        %955 = vmatpush1.msra.mxu0 %v942
        %956 = vmatprep.subr.mxu0 0.0
        %957 = vmatpush1.msra.mxu0 %v941
        %958 = vmatprep.subr.mxu0 0.0
        %959 = vmatpush1.msra.mxu0 %v940
        %960 = vmatprep.subr.mxu0 0.0
        %961 = vmatpush1.msra.mxu0 %v939
        %962 = vmatprep.subr.mxu0 0.0
        %963 = vmatpush1.msra.mxu0 %v938
        %964 = vmatprep.subr.mxu0 0.0
        %965 = vmatpush1.msra.mxu0 %v937
        %966 = vmatprep.subr.mxu0 0.0
        %967 = vmatpush1.msra.mxu0 %v936
        %968 = vmatprep.subr.mxu0 0.0
        %969 = vmatpush1.msra.mxu0 %v935
        %970 = vmatprep.subr.mxu0 0.0
        %971 = vmatpush1.msra.mxu0 %v934
        %972 = vmatprep.subr.mxu0 0.0
        %973 = vmatpush1.msra.mxu0 %v933
        %974 = vmatprep.subr.mxu0 0.0
        %975 = vmatpush1.msra.mxu0 %v932
        %976 = vmatprep.subr.mxu0 0.0
        %977 = vmatpush1.msra.mxu0 %v931
        %978 = vmatprep.subr.mxu0 0.0
        %979 = vmatpush1.msra.mxu0 %v930
        %980 = vmatprep.subr.mxu0 0.0
        %981 = vmatpush1.msra.mxu0 %v929
        %982 = vmatprep.subr.mxu0 0.0
        %983 = vmatpush2.msra.mxu0 0.0
        %984 = vmatprep.subr.mxu0 0.0
        %985 = vmatpush2.msra.mxu0 0.0
        %986 = vmatprep.subr.mxu0 0.0
        %987 = vmatpush2.msra.mxu0 0.0
        %988 = vmatprep.subr.mxu0 0.0
        %989 = vmatpush2.msra.mxu0 0.0
        %990 = vmatprep.subr.mxu0 0.0
        %991 = vmatpush2.msra.mxu0 0.0
        %992 = vmatprep.subr.mxu0 0.0
        %993 = vmatpush2.msra.mxu0 0.0
        %994 = vmatprep.subr.mxu0 0.0
        %995 = vmatpush2.msra.mxu0 0.0
        %996 = vmatprep.subr.mxu0 0.0
        %997 = vmatpush2.msra.mxu0 0.0
        %998 = vmatprep.subr.mxu0 0.0
        %999 = vmatpush2.msra.mxu0 0.0
        %1000 = vmatprep.subr.mxu0 0.0
        %1001 = vmatpush2.msra.mxu0 0.0
        %1002 = vmatprep.subr.mxu0 0.0
        %1003 = vmatpush2.msra.mxu0 0.0
        %1004 = vmatprep.subr.mxu0 0.0
        %1005 = vmatpush2.msra.mxu0 0.0
        %1006 = vmatprep.subr.mxu0 0.0
        %1007 = vmatpush2.msra.mxu0 0.0
        %1008 = vmatprep.subr.mxu0 0.0
        %1009 = vmatpush2.msra.mxu0 0.0
        %1010 = vmatprep.subr.mxu0 0.0
        %1011 = vmatpush2.msra.mxu0 0.0
        %1012 = vmatprep.subr.mxu0 0.0
        %1013 = vmatpush2.msra.mxu0 0.0
        %1014 = vmatprep.mubr.f32.mxu0 0.0
        %1015 = vmatmul.mubr.f32.gmra.mxu0 %v925
        %v1016 = vpop.f32.mrf.mxu0
        %v1017 = vadd.f32 %v949, %v1016
        %v1018 = vpop.f32.mrf.mxu0
        %1019 = vmatprep.mubr.f32.mxu0 0.0
        %1020 = vmatmul.mubr.f32.gmra.mxu0 %v926
        %v1021 = vpop.f32.mrf.mxu0
        %v1022 = vadd.f32 %v949, %v1021
        %v1023 = vpop.f32.mrf.mxu0
        %1024 = vmatprep.mubr.f32.mxu0 0.0
        %1025 = vmatmul.mubr.f32.gmra.mxu0 %v927
        %v1026 = vpop.f32.mrf.mxu0
        %v1027 = vadd.f32 %v949, %v1026
        %v1028 = vpop.f32.mrf.mxu0
        %1029 = vmatprep.mubr.f32.mxu0 0.0
        %1030 = vmatmul.mubr.f32.gmra.mxu0 %v928
        %v1031 = vpop.f32.mrf.mxu0
        %v1032 = vadd.f32 %v949, %v1031
        %v1033 = vpop.f32.mrf.mxu0
        %1034 = vdwg.mxu0
        %vm1035 = vcmp.ge.f32.partialorder %v1017, 0.0
        %vm1036 = vcmp.ge.f32.partialorder %v1022, 0.0
        %vm1037 = vcmp.ge.f32.partialorder %v1027, 0.0
        %vm1038 = vcmp.ge.f32.partialorder %v1032, 0.0
        %v1039 = vld [vmem:[#allocation14 + $0x2] sm:$0x1]
        %v1040 = vlaneseq
        %v1041 = vshrl.u32 %v1040, 7
        %v1042 = vsub.s32 0, %v1041
        %v1043 = vrot.slane %v1039, %v1042
        %v1044 = vmul.f32 %v1043, %v1017
        %v1045 = vmul.f32 %v1043, %v1022
        %v1046 = vmul.f32 %v1043, %v1027
        %v1047 = vmul.f32 %v1043, %v1032
        %v1048 = vsel %vm1035, %v1017, %v1044
        %v1049 = vsel %vm1036, %v1022, %v1045
        %v1050 = vsel %vm1037, %v1027, %v1046
        %v1051 = vsel %vm1038, %v1032, %v1047
        %v1052 = vld [vmem:[#allocation10] sm:$0xff]
        %v1053 = vld [vmem:[#allocation10 + $0x8] sm:$0xff]
        %v1054 = vld [vmem:[#allocation10 + $0x10] sm:$0xff]
        %v1055 = vld [vmem:[#allocation10 + $0x18] sm:$0xff]
        %v1056 = vld [vmem:[#allocation10 + $0x20] sm:$0xff]
        %v1057 = vld [vmem:[#allocation10 + $0x28] sm:$0xff]
        %v1058 = vld [vmem:[#allocation10 + $0x30] sm:$0xff]
        %v1059 = vld [vmem:[#allocation10 + $0x38] sm:$0xff]
        %v1060 = vld [vmem:[#allocation10 + $0x40] sm:$0xff]
        %v1061 = vld [vmem:[#allocation10 + $0x48] sm:$0xff]
        %v1062 = vld [vmem:[#allocation10 + $0x50] sm:$0xff]
        %v1063 = vld [vmem:[#allocation10 + $0x58] sm:$0xff]
        %v1064 = vld [vmem:[#allocation10 + $0x60] sm:$0xff]
        %v1065 = vld [vmem:[#allocation10 + $0x68] sm:$0xff]
        %v1066 = vld [vmem:[#allocation10 + $0x70] sm:$0xff]
        %v1067 = vld [vmem:[#allocation10 + $0x78] sm:$0xff]
        %v1068 = vld [vmem:[%s7 + $0x3] sm:$0x1]
        %v1069 = vlaneseq
        %v1070 = vshrl.u32 %v1069, 7
        %v1071 = vsub.s32 0, %v1070
        %v1072 = vrot.slane %v1068, %v1071
        %1073 = vmatprep.subr.mxu0 0.0
        %1074 = vmatpush1.msra.mxu0 %v1067
        %1075 = vmatprep.subr.mxu0 0.0
        %1076 = vmatpush1.msra.mxu0 %v1066
        %1077 = vmatprep.subr.mxu0 0.0
        %1078 = vmatpush1.msra.mxu0 %v1065
        %1079 = vmatprep.subr.mxu0 0.0
        %1080 = vmatpush1.msra.mxu0 %v1064
        %1081 = vmatprep.subr.mxu0 0.0
        %1082 = vmatpush1.msra.mxu0 %v1063
        %1083 = vmatprep.subr.mxu0 0.0
        %1084 = vmatpush1.msra.mxu0 %v1062
        %1085 = vmatprep.subr.mxu0 0.0
        %1086 = vmatpush1.msra.mxu0 %v1061
        %1087 = vmatprep.subr.mxu0 0.0
        %1088 = vmatpush1.msra.mxu0 %v1060
        %1089 = vmatprep.subr.mxu0 0.0
        %1090 = vmatpush1.msra.mxu0 %v1059
        %1091 = vmatprep.subr.mxu0 0.0
        %1092 = vmatpush1.msra.mxu0 %v1058
        %1093 = vmatprep.subr.mxu0 0.0
        %1094 = vmatpush1.msra.mxu0 %v1057
        %1095 = vmatprep.subr.mxu0 0.0
        %1096 = vmatpush1.msra.mxu0 %v1056
        %1097 = vmatprep.subr.mxu0 0.0
        %1098 = vmatpush1.msra.mxu0 %v1055
        %1099 = vmatprep.subr.mxu0 0.0
        %1100 = vmatpush1.msra.mxu0 %v1054
        %1101 = vmatprep.subr.mxu0 0.0
        %1102 = vmatpush1.msra.mxu0 %v1053
        %1103 = vmatprep.subr.mxu0 0.0
        %1104 = vmatpush1.msra.mxu0 %v1052
        %1105 = vmatprep.subr.mxu0 0.0
        %1106 = vmatpush2.msra.mxu0 0.0
        %1107 = vmatprep.subr.mxu0 0.0
        %1108 = vmatpush2.msra.mxu0 0.0
        %1109 = vmatprep.subr.mxu0 0.0
        %1110 = vmatpush2.msra.mxu0 0.0
        %1111 = vmatprep.subr.mxu0 0.0
        %1112 = vmatpush2.msra.mxu0 0.0
        %1113 = vmatprep.subr.mxu0 0.0
        %1114 = vmatpush2.msra.mxu0 0.0
        %1115 = vmatprep.subr.mxu0 0.0
        %1116 = vmatpush2.msra.mxu0 0.0
        %1117 = vmatprep.subr.mxu0 0.0
        %1118 = vmatpush2.msra.mxu0 0.0
        %1119 = vmatprep.subr.mxu0 0.0
        %1120 = vmatpush2.msra.mxu0 0.0
        %1121 = vmatprep.subr.mxu0 0.0
        %1122 = vmatpush2.msra.mxu0 0.0
        %1123 = vmatprep.subr.mxu0 0.0
        %1124 = vmatpush2.msra.mxu0 0.0
        %1125 = vmatprep.subr.mxu0 0.0
        %1126 = vmatpush2.msra.mxu0 0.0
        %1127 = vmatprep.subr.mxu0 0.0
        %1128 = vmatpush2.msra.mxu0 0.0
        %1129 = vmatprep.subr.mxu0 0.0
        %1130 = vmatpush2.msra.mxu0 0.0
        %1131 = vmatprep.subr.mxu0 0.0
        %1132 = vmatpush2.msra.mxu0 0.0
        %1133 = vmatprep.subr.mxu0 0.0
        %1134 = vmatpush2.msra.mxu0 0.0
        %1135 = vmatprep.subr.mxu0 0.0
        %1136 = vmatpush2.msra.mxu0 0.0
        %1137 = vmatprep.mubr.f32.mxu0 0.0
        %1138 = vmatmul.mubr.f32.gmra.mxu0 %v1048
        %v1139 = vpop.f32.mrf.mxu0
        %v1140 = vadd.f32 %v1072, %v1139
        %v1141 = vpop.f32.mrf.mxu0
        %1142 = vmatprep.mubr.f32.mxu0 0.0
        %1143 = vmatmul.mubr.f32.gmra.mxu0 %v1049
        %v1144 = vpop.f32.mrf.mxu0
        %v1145 = vadd.f32 %v1072, %v1144
        %v1146 = vpop.f32.mrf.mxu0
        %1147 = vmatprep.mubr.f32.mxu0 0.0
        %1148 = vmatmul.mubr.f32.gmra.mxu0 %v1050
        %v1149 = vpop.f32.mrf.mxu0
        %v1150 = vadd.f32 %v1072, %v1149
        %v1151 = vpop.f32.mrf.mxu0
        %1152 = vmatprep.mubr.f32.mxu0 0.0
        %1153 = vmatmul.mubr.f32.gmra.mxu0 %v1051
        %v1154 = vpop.f32.mrf.mxu0
        %v1155 = vadd.f32 %v1072, %v1154
        %v1156 = vpop.f32.mrf.mxu0
        %1157 = vdwg.mxu0
        %vm1158 = vcmp.ge.f32.partialorder %v1140, 0.0
        %vm1159 = vcmp.ge.f32.partialorder %v1145, 0.0
        %vm1160 = vcmp.ge.f32.partialorder %v1150, 0.0
        %vm1161 = vcmp.ge.f32.partialorder %v1155, 0.0
        %v1162 = vld [vmem:[#allocation14 + $0x3] sm:$0x1]
        %v1163 = vlaneseq
        %v1164 = vshrl.u32 %v1163, 7
        %v1165 = vsub.s32 0, %v1164
        %v1166 = vrot.slane %v1162, %v1165
        %v1167 = vmul.f32 %v1166, %v1140
        %v1168 = vmul.f32 %v1166, %v1145
        %v1169 = vmul.f32 %v1166, %v1150
        %v1170 = vmul.f32 %v1166, %v1155
        %v1171 = vsel %vm1158, %v1140, %v1167
        %v1172 = vsel %vm1159, %v1145, %v1168
        %v1173 = vsel %vm1160, %v1150, %v1169
        %v1174 = vsel %vm1161, %v1155, %v1170
        %v1175 = vadd.f32 %v1171, %v659
        %v1176 = vadd.f32 %v1172, %v660
        %v1177 = vadd.f32 %v1173, %v661
        %v1178 = vadd.f32 %v1174, %v662
        %v1179 = vrot.slane %v1175, 7
        %v1180 = vrot.slane %v1176, 7
        %v1181 = vrot.slane %v1177, 7
        %v1182 = vrot.slane %v1178, 7
        %v1183 = vsel %vm667, %v1181, %v1182
        %v1184 = vsel %vm667, %v1180, %v1181
        %v1185 = vsel %vm667, %v1179, %v1180
        %v1186 = vsel %vm667, %v1182, %v1179
        %v1187 = vmul.f32 %v1186, %v515
        %v1188 = vmul.f32 %v1185, %v516
        %v1189 = vmul.f32 %v1184, %v517
        %v1190 = vmul.f32 %v1183, %v518
        %v1191 = vrot.slane %v1175, 1
        %v1192 = vrot.slane %v1176, 1
        %v1193 = vrot.slane %v1177, 1
        %v1194 = vrot.slane %v1178, 1
        %v1195 = vsel %vm680, %v1193, %v1194
        %v1196 = vsel %vm680, %v1192, %v1193
        %v1197 = vsel %vm680, %v1191, %v1192
        %v1198 = vsel %vm680, %v1194, %v1191
        %v1199 = vmul.f32 %v1197, %v527
        %v1200 = vmul.f32 %v1196, %v528
        %v1201 = vmul.f32 %v1195, %v529
        %v1202 = vmul.f32 %v1198, %v530
        %v1203 = vld [vmem:[#allocation11] sm:$0xff]
        %v1204 = vld [vmem:[#allocation11 + $0x8] sm:$0xff]
        %v1205 = vld [vmem:[#allocation11 + $0x10] sm:$0xff]
        %v1206 = vld [vmem:[#allocation11 + $0x18] sm:$0xff]
        %v1207 = vld [vmem:[#allocation11 + $0x20] sm:$0xff]
        %v1208 = vld [vmem:[#allocation11 + $0x28] sm:$0xff]
        %v1209 = vld [vmem:[#allocation11 + $0x30] sm:$0xff]
        %v1210 = vld [vmem:[#allocation11 + $0x38] sm:$0xff]
        %v1211 = vld [vmem:[#allocation11 + $0x40] sm:$0xff]
        %v1212 = vld [vmem:[#allocation11 + $0x48] sm:$0xff]
        %v1213 = vld [vmem:[#allocation11 + $0x50] sm:$0xff]
        %v1214 = vld [vmem:[#allocation11 + $0x58] sm:$0xff]
        %v1215 = vld [vmem:[#allocation11 + $0x60] sm:$0xff]
        %v1216 = vld [vmem:[#allocation11 + $0x68] sm:$0xff]
        %v1217 = vld [vmem:[#allocation11 + $0x70] sm:$0xff]
        %v1218 = vld [vmem:[#allocation11 + $0x78] sm:$0xff]
        %v1219 = vld [vmem:[#allocation11 + $0x80] sm:$0xff]
        %v1220 = vld [vmem:[#allocation11 + $0x88] sm:$0xff]
        %v1221 = vld [vmem:[#allocation11 + $0x90] sm:$0xff]
        %v1222 = vld [vmem:[#allocation11 + $0x98] sm:$0xff]
        %v1223 = vld [vmem:[#allocation11 + $0xa0] sm:$0xff]
        %v1224 = vld [vmem:[#allocation11 + $0xa8] sm:$0xff]
        %v1225 = vld [vmem:[#allocation11 + $0xb0] sm:$0xff]
        %v1226 = vld [vmem:[#allocation11 + $0xb8] sm:$0xff]
        %v1227 = vld [vmem:[#allocation11 + $0xc0] sm:$0xff]
        %v1228 = vld [vmem:[#allocation11 + $0xc8] sm:$0xff]
        %v1229 = vld [vmem:[#allocation11 + $0xd0] sm:$0xff]
        %v1230 = vld [vmem:[#allocation11 + $0xd8] sm:$0xff]
        %v1231 = vld [vmem:[#allocation11 + $0xe0] sm:$0xff]
        %v1232 = vld [vmem:[#allocation11 + $0xe8] sm:$0xff]
        %v1233 = vld [vmem:[#allocation11 + $0xf0] sm:$0xff]
        %v1234 = vld [vmem:[#allocation11 + $0xf8] sm:$0xff]
        %v1235 = vld [vmem:[#allocation11 + $0x100] sm:$0xff]
        %v1236 = vld [vmem:[#allocation11 + $0x108] sm:$0xff]
        %v1237 = vld [vmem:[#allocation11 + $0x110] sm:$0xff]
        %v1238 = vld [vmem:[#allocation11 + $0x118] sm:$0xff]
        %v1239 = vld [vmem:[#allocation11 + $0x120] sm:$0xff]
        %v1240 = vld [vmem:[#allocation11 + $0x128] sm:$0xff]
        %v1241 = vld [vmem:[#allocation11 + $0x130] sm:$0xff]
        %v1242 = vld [vmem:[#allocation11 + $0x138] sm:$0xff]
        %v1243 = vld [vmem:[#allocation11 + $0x140] sm:$0xff]
        %v1244 = vld [vmem:[#allocation11 + $0x148] sm:$0xff]
        %v1245 = vld [vmem:[#allocation11 + $0x150] sm:$0xff]
        %v1246 = vld [vmem:[#allocation11 + $0x158] sm:$0xff]
        %v1247 = vld [vmem:[#allocation11 + $0x160] sm:$0xff]
        %v1248 = vld [vmem:[#allocation11 + $0x168] sm:$0xff]
        %v1249 = vld [vmem:[#allocation11 + $0x170] sm:$0xff]
        %v1250 = vld [vmem:[#allocation11 + $0x178] sm:$0xff]
        %v1251 = vld [vmem:[%s7 + $0x4] sm:$0x1]
        %v1252 = vlaneseq
        %v1253 = vshrl.u32 %v1252, 7
        %v1254 = vsub.s32 0, %v1253
        %v1255 = vrot.slane %v1251, %v1254
        %1256 = vmatprep.subr.mxu0 0.0
        %1257 = vmatpush1.msra.mxu0 %v1218
        %1258 = vmatprep.subr.mxu0 0.0
        %1259 = vmatpush1.msra.mxu0 %v1217
        %1260 = vmatprep.subr.mxu0 0.0
        %1261 = vmatpush1.msra.mxu0 %v1216
        %1262 = vmatprep.subr.mxu0 0.0
        %1263 = vmatpush1.msra.mxu0 %v1215
        %1264 = vmatprep.subr.mxu0 0.0
        %1265 = vmatpush1.msra.mxu0 %v1214
        %1266 = vmatprep.subr.mxu0 0.0
        %1267 = vmatpush1.msra.mxu0 %v1213
        %1268 = vmatprep.subr.mxu0 0.0
        %1269 = vmatpush1.msra.mxu0 %v1212
        %1270 = vmatprep.subr.mxu0 0.0
        %1271 = vmatpush1.msra.mxu0 %v1211
        %1272 = vmatprep.subr.mxu0 0.0
        %1273 = vmatpush1.msra.mxu0 %v1210
        %1274 = vmatprep.subr.mxu0 0.0
        %1275 = vmatpush1.msra.mxu0 %v1209
        %1276 = vmatprep.subr.mxu0 0.0
        %1277 = vmatpush1.msra.mxu0 %v1208
        %1278 = vmatprep.subr.mxu0 0.0
        %1279 = vmatpush1.msra.mxu0 %v1207
        %1280 = vmatprep.subr.mxu0 0.0
        %1281 = vmatpush1.msra.mxu0 %v1206
        %1282 = vmatprep.subr.mxu0 0.0
        %1283 = vmatpush1.msra.mxu0 %v1205
        %1284 = vmatprep.subr.mxu0 0.0
        %1285 = vmatpush1.msra.mxu0 %v1204
        %1286 = vmatprep.subr.mxu0 0.0
        %1287 = vmatpush1.msra.mxu0 %v1203
        %1288 = vmatprep.subr.mxu0 0.0
        %1289 = vmatpush2.msra.mxu0 %v1234
        %1290 = vmatprep.subr.mxu0 0.0
        %1291 = vmatpush2.msra.mxu0 %v1233
        %1292 = vmatprep.subr.mxu0 0.0
        %1293 = vmatpush2.msra.mxu0 %v1232
        %1294 = vmatprep.subr.mxu0 0.0
        %1295 = vmatpush2.msra.mxu0 %v1231
        %1296 = vmatprep.subr.mxu0 0.0
        %1297 = vmatpush2.msra.mxu0 %v1230
        %1298 = vmatprep.subr.mxu0 0.0
        %1299 = vmatpush2.msra.mxu0 %v1229
        %1300 = vmatprep.subr.mxu0 0.0
        %1301 = vmatpush2.msra.mxu0 %v1228
        %1302 = vmatprep.subr.mxu0 0.0
        %1303 = vmatpush2.msra.mxu0 %v1227
        %1304 = vmatprep.subr.mxu0 0.0
        %1305 = vmatpush2.msra.mxu0 %v1226
        %1306 = vmatprep.subr.mxu0 0.0
        %1307 = vmatpush2.msra.mxu0 %v1225
        %1308 = vmatprep.subr.mxu0 0.0
        %1309 = vmatpush2.msra.mxu0 %v1224
        %1310 = vmatprep.subr.mxu0 0.0
        %1311 = vmatpush2.msra.mxu0 %v1223
        %1312 = vmatprep.subr.mxu0 0.0
        %1313 = vmatpush2.msra.mxu0 %v1222
        %1314 = vmatprep.subr.mxu0 0.0
        %1315 = vmatpush2.msra.mxu0 %v1221
        %1316 = vmatprep.subr.mxu0 0.0
        %1317 = vmatpush2.msra.mxu0 %v1220
        %1318 = vmatprep.subr.mxu0 0.0
        %1319 = vmatpush2.msra.mxu0 %v1219
        %1320 = vmatprep.mubr.f32.mxu0 %v1175
        %1321 = vmatmul.mubr.f32.gmra.mxu0 %v1187
        %v1322 = vpop.f32.mrf.mxu0
        %v1323 = vadd.f32 %v1255, %v1322
        %v1324 = vpop.f32.mrf.mxu0
        %1325 = vmatprep.mubr.f32.mxu0 %v1176
        %1326 = vmatmul.mubr.f32.gmra.mxu0 %v1188
        %v1327 = vpop.f32.mrf.mxu0
        %v1328 = vadd.f32 %v1255, %v1327
        %v1329 = vpop.f32.mrf.mxu0
        %1330 = vmatprep.mubr.f32.mxu0 %v1177
        %1331 = vmatmul.mubr.f32.gmra.mxu0 %v1189
        %v1332 = vpop.f32.mrf.mxu0
        %v1333 = vadd.f32 %v1255, %v1332
        %v1334 = vpop.f32.mrf.mxu0
        %1335 = vmatprep.mubr.f32.mxu0 %v1178
        %1336 = vmatmul.mubr.f32.gmra.mxu0 %v1190
        %v1337 = vpop.f32.mrf.mxu0
        %v1338 = vadd.f32 %v1255, %v1337
        %v1339 = vpop.f32.mrf.mxu0
        %1340 = vdwg.mxu0
        %1341 = vmatprep.subr.mxu0 0.0
        %1342 = vmatpush1.msra.mxu0 %v1250
        %1343 = vmatprep.subr.mxu0 0.0
        %1344 = vmatpush1.msra.mxu0 %v1249
        %1345 = vmatprep.subr.mxu0 0.0
        %1346 = vmatpush1.msra.mxu0 %v1248
        %1347 = vmatprep.subr.mxu0 0.0
        %1348 = vmatpush1.msra.mxu0 %v1247
        %1349 = vmatprep.subr.mxu0 0.0
        %1350 = vmatpush1.msra.mxu0 %v1246
        %1351 = vmatprep.subr.mxu0 0.0
        %1352 = vmatpush1.msra.mxu0 %v1245
        %1353 = vmatprep.subr.mxu0 0.0
        %1354 = vmatpush1.msra.mxu0 %v1244
        %1355 = vmatprep.subr.mxu0 0.0
        %1356 = vmatpush1.msra.mxu0 %v1243
        %1357 = vmatprep.subr.mxu0 0.0
        %1358 = vmatpush1.msra.mxu0 %v1242
        %1359 = vmatprep.subr.mxu0 0.0
        %1360 = vmatpush1.msra.mxu0 %v1241
        %1361 = vmatprep.subr.mxu0 0.0
        %1362 = vmatpush1.msra.mxu0 %v1240
        %1363 = vmatprep.subr.mxu0 0.0
        %1364 = vmatpush1.msra.mxu0 %v1239
        %1365 = vmatprep.subr.mxu0 0.0
        %1366 = vmatpush1.msra.mxu0 %v1238
        %1367 = vmatprep.subr.mxu0 0.0
        %1368 = vmatpush1.msra.mxu0 %v1237
        %1369 = vmatprep.subr.mxu0 0.0
        %1370 = vmatpush1.msra.mxu0 %v1236
        %1371 = vmatprep.subr.mxu0 0.0
        %1372 = vmatpush1.msra.mxu0 %v1235
        %1373 = vmatprep.subr.mxu0 0.0
        %1374 = vmatpush2.msra.mxu0 0.0
        %1375 = vmatprep.subr.mxu0 0.0
        %1376 = vmatpush2.msra.mxu0 0.0
        %1377 = vmatprep.subr.mxu0 0.0
        %1378 = vmatpush2.msra.mxu0 0.0
        %1379 = vmatprep.subr.mxu0 0.0
        %1380 = vmatpush2.msra.mxu0 0.0
        %1381 = vmatprep.subr.mxu0 0.0
        %1382 = vmatpush2.msra.mxu0 0.0
        %1383 = vmatprep.subr.mxu0 0.0
        %1384 = vmatpush2.msra.mxu0 0.0
        %1385 = vmatprep.subr.mxu0 0.0
        %1386 = vmatpush2.msra.mxu0 0.0
        %1387 = vmatprep.subr.mxu0 0.0
        %1388 = vmatpush2.msra.mxu0 0.0
        %1389 = vmatprep.subr.mxu0 0.0
        %1390 = vmatpush2.msra.mxu0 0.0
        %1391 = vmatprep.subr.mxu0 0.0
        %1392 = vmatpush2.msra.mxu0 0.0
        %1393 = vmatprep.subr.mxu0 0.0
        %1394 = vmatpush2.msra.mxu0 0.0
        %1395 = vmatprep.subr.mxu0 0.0
        %1396 = vmatpush2.msra.mxu0 0.0
        %1397 = vmatprep.subr.mxu0 0.0
        %1398 = vmatpush2.msra.mxu0 0.0
        %1399 = vmatprep.subr.mxu0 0.0
        %1400 = vmatpush2.msra.mxu0 0.0
        %1401 = vmatprep.subr.mxu0 0.0
        %1402 = vmatpush2.msra.mxu0 0.0
        %1403 = vmatprep.subr.mxu0 0.0
        %1404 = vmatpush2.msra.mxu0 0.0
        %1405 = vmatprep.mubr.f32.mxu0 0.0
        %1406 = vmatmul.mubr.f32.gmra.mxu0 %v1199
        %v1407 = vpop.f32.mrf.mxu0
        %v1408 = vadd.f32 %v1323, %v1407
        %v1409 = vpop.f32.mrf.mxu0
        %1410 = vmatprep.mubr.f32.mxu0 0.0
        %1411 = vmatmul.mubr.f32.gmra.mxu0 %v1200
        %v1412 = vpop.f32.mrf.mxu0
        %v1413 = vadd.f32 %v1328, %v1412
        %v1414 = vpop.f32.mrf.mxu0
        %1415 = vmatprep.mubr.f32.mxu0 0.0
        %1416 = vmatmul.mubr.f32.gmra.mxu0 %v1201
        %v1417 = vpop.f32.mrf.mxu0
        %v1418 = vadd.f32 %v1333, %v1417
        %v1419 = vpop.f32.mrf.mxu0
        %1420 = vmatprep.mubr.f32.mxu0 0.0
        %1421 = vmatmul.mubr.f32.gmra.mxu0 %v1202
        %v1422 = vpop.f32.mrf.mxu0
        %v1423 = vadd.f32 %v1338, %v1422
        %v1424 = vpop.f32.mrf.mxu0
        %1425 = vdwg.mxu0
        %vm1426 = vcmp.ge.f32.partialorder %v1408, 0.0
        %vm1427 = vcmp.ge.f32.partialorder %v1413, 0.0
        %vm1428 = vcmp.ge.f32.partialorder %v1418, 0.0
        %vm1429 = vcmp.ge.f32.partialorder %v1423, 0.0
        %v1430 = vld [vmem:[#allocation14 + $0x4] sm:$0x1]
        %v1431 = vlaneseq
        %v1432 = vshrl.u32 %v1431, 7
        %v1433 = vsub.s32 0, %v1432
        %v1434 = vrot.slane %v1430, %v1433
        %v1435 = vmul.f32 %v1434, %v1408
        %v1436 = vmul.f32 %v1434, %v1413
        %v1437 = vmul.f32 %v1434, %v1418
        %v1438 = vmul.f32 %v1434, %v1423
        %v1439 = vsel %vm1426, %v1408, %v1435
        %v1440 = vsel %vm1427, %v1413, %v1436
        %v1441 = vsel %vm1428, %v1418, %v1437
        %v1442 = vsel %vm1429, %v1423, %v1438
        %v1443 = vadd.f32 %v1439, %v925
        %v1444 = vadd.f32 %v1440, %v926
        %v1445 = vadd.f32 %v1441, %v927
        %v1446 = vadd.f32 %v1442, %v928
        %v1447 = vld [vmem:[#allocation13] sm:$0xff]
        %v1448 = vld [vmem:[#allocation13 + $0x8] sm:$0xff]
        %v1449 = vld [vmem:[#allocation13 + $0x10] sm:$0xff]
        %v1450 = vld [vmem:[#allocation13 + $0x18] sm:$0xff]
        %v1451 = vld [vmem:[#allocation13 + $0x20] sm:$0xff]
        %v1452 = vld [vmem:[#allocation13 + $0x28] sm:$0xff]
        %v1453 = vld [vmem:[#allocation13 + $0x30] sm:$0xff]
        %v1454 = vld [vmem:[#allocation13 + $0x38] sm:$0xff]
        %v1455 = vld [vmem:[#allocation13 + $0x40] sm:$0xff]
        %v1456 = vld [vmem:[#allocation13 + $0x48] sm:$0xff]
        %v1457 = vld [vmem:[#allocation13 + $0x50] sm:$0xff]
        %v1458 = vld [vmem:[#allocation13 + $0x58] sm:$0xff]
        %v1459 = vld [vmem:[#allocation13 + $0x60] sm:$0xff]
        %v1460 = vld [vmem:[#allocation13 + $0x68] sm:$0xff]
        %v1461 = vld [vmem:[#allocation13 + $0x70] sm:$0xff]
        %v1462 = vld [vmem:[#allocation13 + $0x78] sm:$0xff]
        %v1463 = vld [vmem:[%s7 + $0x5] sm:$0x1]
        %v1464 = vlaneseq
        %v1465 = vshrl.u32 %v1464, 7
        %v1466 = vsub.s32 0, %v1465
        %v1467 = vrot.slane %v1463, %v1466
        %1468 = vmatprep.subr.mxu0 0.0
        %1469 = vmatpush1.msra.mxu0 %v1462
        %1470 = vmatprep.subr.mxu0 0.0
        %1471 = vmatpush1.msra.mxu0 %v1461
        %1472 = vmatprep.subr.mxu0 0.0
        %1473 = vmatpush1.msra.mxu0 %v1460
        %1474 = vmatprep.subr.mxu0 0.0
        %1475 = vmatpush1.msra.mxu0 %v1459
        %1476 = vmatprep.subr.mxu0 0.0
        %1477 = vmatpush1.msra.mxu0 %v1458
        %1478 = vmatprep.subr.mxu0 0.0
        %1479 = vmatpush1.msra.mxu0 %v1457
        %1480 = vmatprep.subr.mxu0 0.0
        %1481 = vmatpush1.msra.mxu0 %v1456
        %1482 = vmatprep.subr.mxu0 0.0
        %1483 = vmatpush1.msra.mxu0 %v1455
        %1484 = vmatprep.subr.mxu0 0.0
        %1485 = vmatpush1.msra.mxu0 %v1454
        %1486 = vmatprep.subr.mxu0 0.0
        %1487 = vmatpush1.msra.mxu0 %v1453
        %1488 = vmatprep.subr.mxu0 0.0
        %1489 = vmatpush1.msra.mxu0 %v1452
        %1490 = vmatprep.subr.mxu0 0.0
        %1491 = vmatpush1.msra.mxu0 %v1451
        %1492 = vmatprep.subr.mxu0 0.0
        %1493 = vmatpush1.msra.mxu0 %v1450
        %1494 = vmatprep.subr.mxu0 0.0
        %1495 = vmatpush1.msra.mxu0 %v1449
        %1496 = vmatprep.subr.mxu0 0.0
        %1497 = vmatpush1.msra.mxu0 %v1448
        %1498 = vmatprep.subr.mxu0 0.0
        %1499 = vmatpush1.msra.mxu0 %v1447
        %1500 = vmatprep.subr.mxu0 0.0
        %1501 = vmatpush2.msra.mxu0 0.0
        %1502 = vmatprep.subr.mxu0 0.0
        %1503 = vmatpush2.msra.mxu0 0.0
        %1504 = vmatprep.subr.mxu0 0.0
        %1505 = vmatpush2.msra.mxu0 0.0
        %1506 = vmatprep.subr.mxu0 0.0
        %1507 = vmatpush2.msra.mxu0 0.0
        %1508 = vmatprep.subr.mxu0 0.0
        %1509 = vmatpush2.msra.mxu0 0.0
        %1510 = vmatprep.subr.mxu0 0.0
        %1511 = vmatpush2.msra.mxu0 0.0
        %1512 = vmatprep.subr.mxu0 0.0
        %1513 = vmatpush2.msra.mxu0 0.0
        %1514 = vmatprep.subr.mxu0 0.0
        %1515 = vmatpush2.msra.mxu0 0.0
        %1516 = vmatprep.subr.mxu0 0.0
        %1517 = vmatpush2.msra.mxu0 0.0
        %1518 = vmatprep.subr.mxu0 0.0
        %1519 = vmatpush2.msra.mxu0 0.0
        %1520 = vmatprep.subr.mxu0 0.0
        %1521 = vmatpush2.msra.mxu0 0.0
        %1522 = vmatprep.subr.mxu0 0.0
        %1523 = vmatpush2.msra.mxu0 0.0
        %1524 = vmatprep.subr.mxu0 0.0
        %1525 = vmatpush2.msra.mxu0 0.0
        %1526 = vmatprep.subr.mxu0 0.0
        %1527 = vmatpush2.msra.mxu0 0.0
        %1528 = vmatprep.subr.mxu0 0.0
        %1529 = vmatpush2.msra.mxu0 0.0
        %1530 = vmatprep.subr.mxu0 0.0
        %1531 = vmatpush2.msra.mxu0 0.0
        %1532 = vmatprep.mubr.f32.mxu0 0.0
        %1533 = vmatmul.mubr.f32.gmra.mxu0 %v1443
        %v1534 = vpop.f32.mrf.mxu0
        %v1535 = vadd.f32 %v1467, %v1534
        %v1536 = vpop.f32.mrf.mxu0
        %1537 = vmatprep.mubr.f32.mxu0 0.0
        %1538 = vmatmul.mubr.f32.gmra.mxu0 %v1444
        %v1539 = vpop.f32.mrf.mxu0
        %v1540 = vadd.f32 %v1467, %v1539
        %v1541 = vpop.f32.mrf.mxu0
        %1542 = vmatprep.mubr.f32.mxu0 0.0
        %1543 = vmatmul.mubr.f32.gmra.mxu0 %v1445
        %v1544 = vpop.f32.mrf.mxu0
        %v1545 = vadd.f32 %v1467, %v1544
        %v1546 = vpop.f32.mrf.mxu0
        %1547 = vmatprep.mubr.f32.mxu0 0.0
        %1548 = vmatmul.mubr.f32.gmra.mxu0 %v1446
        %v1549 = vpop.f32.mrf.mxu0
        %v1550 = vadd.f32 %v1467, %v1549
        %v1551 = vpop.f32.mrf.mxu0
        %1552 = vdwg.mxu0
        %vm1553 = vcmp.ge.f32.partialorder %v1535, 0.0
        %vm1554 = vcmp.ge.f32.partialorder %v1540, 0.0
        %vm1555 = vcmp.ge.f32.partialorder %v1545, 0.0
        %vm1556 = vcmp.ge.f32.partialorder %v1550, 0.0
        %v1557 = vld [vmem:[#allocation14 + $0x5] sm:$0x1]
        %v1558 = vlaneseq
        %v1559 = vshrl.u32 %v1558, 7
        %v1560 = vsub.s32 0, %v1559
        %v1561 = vrot.slane %v1557, %v1560
        %v1562 = vmul.f32 %v1561, %v1535
        %v1563 = vmul.f32 %v1561, %v1540
        %v1564 = vmul.f32 %v1561, %v1545
        %v1565 = vmul.f32 %v1561, %v1550
        %v1566 = vsel %vm1553, %v1535, %v1562
        %v1567 = vsel %vm1554, %v1540, %v1563
        %v1568 = vsel %vm1555, %v1545, %v1564
        %v1569 = vsel %vm1556, %v1550, %v1565
        %v1570 = vadd.f32 %v1566, %v1048
        %v1571 = vadd.f32 %v1567, %v1049
        %v1572 = vadd.f32 %v1568, %v1050
        %v1573 = vadd.f32 %v1569, %v1051
        %1574 = vst [vmem:[%s451] sm:$0xff] %v1570
        %1575 = vst [vmem:[%s451 + $0x8] sm:$0xff] %v1571
        %1576 = vst [vmem:[%s451 + $0x10] sm:$0xff] %v1572
        %1577 = vst [vmem:[%s451 + $0x18] sm:$0xff] %v1573
        %s1578 = sand.u32 %s232, 1
        %s1579 = scalar_lea.sflag [#allocation4], %s1578
        %s1580 = sand.u32 %s232, 1
        %s1581 = smul.addr %s1580, 32
        %s1582 = scalar_lea.vmem [#allocation16], %s1581
        // Predicated region
        $region89: #{tpu_custom_call.1} parent=55 // pred_check
          %p1583 = pneg %p242
        $region90: #{tpu_custom_call.1} parent=55 // pred_check_branch
          %1585 = sbr.rel (%p1583) target = $region92
        $region91: #{tpu_custom_call.1} parent=55 // pred_region
          %s1586 = smul.u32 2, %s30
          %s1588 = ssub.s32 512, 512
          %1589 = vsyncadd %s1579, %s1588
          %s1590 = smul.addr %s1586, 2
          %s1591 = smul.addr %s1590, 128
          %s1592 = scalar_lea.hbm %s9, %s1591
          %s1593 = sshll.u32 %s1582, 4
          %s1594 = int_to_ptr.vmem [resolvable:$true] %s1593
          %1599 = dma.vmem_to_hbm [thread:$0]  %s1594, 512, %s1592, %s1579, 128, 128, 8
        $region92: #{tpu_custom_call.1} parent=55 // pred_fallthru
          _
      $region56: #{tpu_custom_call.1} parent=5 // pred_fallthru
        _
      %p1600 = scmp.le.s32.totalorder 2, %s25
      // Predicated region
      $region93: #{tpu_custom_call.1} parent=5 // pred_check
        %p1601 = pneg %p1600
      $region94: #{tpu_custom_call.1} parent=5 // pred_check_branch
        %1603 = sbr.rel (%p1601) target = $region96
      $region95: #{tpu_custom_call.1} parent=5 // pred_region
        %s1604 = ssub.s32 %s25, 2
        // Predicated region
        $region97: #{tpu_custom_call.1} parent=95 // pred_check
          %p1605 = pneg %p248
        $region98: #{tpu_custom_call.1} parent=95 // pred_check_branch
          %1607 = sbr.rel (%p1605) target = $region100
        $region99: #{tpu_custom_call.1} parent=95 // pred_region
          %s1608 = sand.u32 %s233, 1
          %s1609 = scalar_lea.sflag [#allocation4], %s1608
          %s1610 = sand.u32 %s233, 1
          %s1611 = smul.addr %s1610, 32
          %s1612 = scalar_lea.vmem [#allocation16], %s1611
          %1613 = dma.done %s1609, 512
        $region100: #{tpu_custom_call.1} parent=95 // pred_fallthru
          _
      $region96: #{tpu_custom_call.1} parent=5 // pred_fallthru
        _
    $region6: #{tpu_custom_call.1} parent=1 // loop_footer
      %s29 = sadd.s32 1, %s25
    $region7: #{tpu_custom_call.1} parent=1 // loop_footer_branch
      %24 = sbr.rel target = $region3
    $region8: #{tpu_custom_call.1} parent=1 // loop_exit
      _
    %1614 = vsyncpa [#allocation3], 1
    %s1615 = scalar_lea.sflag [#allocation3], 1
    %1616 = vsyncpa %s1615, 1
    %1617 = vsyncpa [#allocation6], 1
    %1618 = vsyncpa [#allocation9], 1
    %1619 = vsyncpa [#allocation12], 1
    %1620 = vsyncpa [#allocation15], 1
    %1621 = vsyncpa [#allocation4], 1
    %s1622 = scalar_lea.sflag [#allocation4], 1
    %1623 = vsyncpa %s1622, 1

</llo_original>
